<compile_context>
chip_gen: v7x
topology: tpu7x:2x2x1
jax: 0.10.0
libtpu: 0.0.40
codegen_flags: <defaults>
</compile_context>

<pallas_src>
import functools

import jax
import jax.numpy as jnp
import numpy as np
from jax.experimental import pallas as pl
from jax.experimental.pallas import tpu as pltpu

EPS = 1e-5  # BatchNorm2d default eps


def _u_basicblock_kernel(xm_ref, mask_ref, w1_ref, g1_ref, b1_ref,
                         w2_ref, g2_ref, b2_ref,
                         out_ref,
                         p1_ref, p2_ref, ym_ref,
                         *, taps, margin, n_valid):
    # xm_ref  : (Cp,  Pm)       bf16 flattened zero-padded input, channel-major, data at lane
    #                                offset `margin`; channels zero-padded to a multiple of 8.
    # mask_ref: (1,   Pc)       f32  1.0 at interior (valid conv-output) grid positions.
    # w1_ref  : (Cmp, 9*Cp)     bf16 conv1 weights, tap-major packing.
    # w2_ref  : (Cop, 9*Cmp)    bf16 conv2 weights.
    # g*/b*   : (C,   1)        f32  BN affine params (padded rows: gamma=1, beta=0).
    # out_ref : (Cop, Pc)       f32  lane-dense output over the flattened padded grid.
    # p1_ref  : (9*Cp,  Pc)     bf16 scratch: conv1 im2col patch.
    # p2_ref  : (9*Cmp, Pc)     bf16 scratch: conv2 im2col patch.
    # ym_ref  : (Cmp, Pm)       bf16 scratch: margined (zero-halo) intermediate activation.
    Cp = xm_ref.shape[0]
    Cop, Pc = out_ref.shape
    Cmp = w1_ref.shape[0]
    inv_cnt = 1.0 / float(n_valid)

    msk = mask_ref[...]                                    # (1, Pc), 0/1 f32

    # ---- conv1: im2col (9 shifted bf16 lane slices) -> single MXU matmul, K = 9*Cp ----
    for t, d in enumerate(taps):
        p1_ref[t * Cp:(t + 1) * Cp, :] = xm_ref[:, margin + d:margin + d + Pc]
    acc1 = jnp.dot(w1_ref[...], p1_ref[...],
                   preferred_element_type=jnp.float32)     # (Cmp, Pc) f32, lane-dense

    # ---- bn1: single-pass batch stats over valid pixels, folded into scale/shift, + ReLU ----
    m1 = acc1 * msk                                        # masked copy (few vregs; no spill)
    mean1 = jnp.sum(m1, axis=1, keepdims=True) * inv_cnt
    var1 = jnp.sum(m1 * m1, axis=1, keepdims=True) * inv_cnt - mean1 * mean1
    a1 = g1_ref[...] * jax.lax.rsqrt(var1 + EPS)           # (Cmp, 1)
    c1 = b1_ref[...] - mean1 * a1                          # (Cmp, 1)
    y1 = jnp.maximum(acc1 * a1 + c1, 0.0) * msk            # mask == zero-padding halo for conv2

    # ---- margined bf16 intermediate: zero only the two halo margins + one aligned store ----
    zeros_margin = jnp.zeros((Cmp, margin), jnp.bfloat16)
    ym_ref[:, :margin] = zeros_margin
    ym_ref[:, margin + Pc:] = zeros_margin
    ym_ref[:, margin:margin + Pc] = y1.astype(jnp.bfloat16)

    # ---- conv2: same im2col trick on the intermediate -> single MXU matmul, K = 9*Cmp ----
    for t, d in enumerate(taps):
        p2_ref[t * Cmp:(t + 1) * Cmp, :] = ym_ref[:, margin + d:margin + d + Pc]
    acc2 = jnp.dot(w2_ref[...], p2_ref[...],
                   preferred_element_type=jnp.float32)     # (Cop, Pc) f32

    # ---- bn2 (folded scale/shift) + ReLU; no output mask (wrapper crops to valid pixels) ----
    m2 = acc2 * msk
    mean2 = jnp.sum(m2, axis=1, keepdims=True) * inv_cnt
    var2 = jnp.sum(m2 * m2, axis=1, keepdims=True) * inv_cnt - mean2 * mean2
    a2 = g2_ref[...] * jax.lax.rsqrt(var2 + EPS)
    c2 = b2_ref[...] - mean2 * a2
    out_ref[...] = jnp.maximum(acc2 * a2 + c2, 0.0)


def u_basicblock_forward(x_nchw, w1, g1, b1, w2, g2, b2):
    """x: (N, Cin, H, W); w*: PyTorch (Cout, Cin, 3, 3); g*/b*: (C,). Returns NCHW f32."""
    N, Cin, H, W = x_nchw.shape
    Cmid = w1.shape[0]
    Cout = w2.shape[0]
    Hp, Wp = H + 2, W + 2
    P = N * Hp * Wp

    rnd = lambda v, m: ((v + m - 1) // m) * m
    Pc = rnd(P, 128)             # lane-padded flattened padded grid
    margin = rnd(Wp + 1, 128)    # lane-aligned halo margin (>= max |tap shift|)
    Pm = margin + Pc + margin
    Cp = rnd(Cin, 8)             # sublane-padded channel counts
    Cmp = rnd(Cmid, 8)
    Cop = rnd(Cout, 8)

    f32 = jnp.float32
    bf16 = jnp.bfloat16

    # -- input: NCHW -> zero-pad spatial -> channel-major flattened grid with halo margins --
    # bf16 here: the MXU consumes bf16 anyway, and it halves the 9 tap-copy traffic in-kernel.
    xpad = jnp.pad(x_nchw.astype(f32), ((0, 0), (0, 0), (1, 1), (1, 1)))   # (N, Cin, Hp, Wp)
    xflat = jnp.transpose(xpad, (1, 0, 2, 3)).reshape(Cin, P)              # (Cin, P)
    xm = jnp.zeros((Cp, Pm), bf16).at[:Cin, margin:margin + P].set(xflat.astype(bf16))

    # -- validity mask over the flattened padded grid (interior pixels only) --
    q = np.arange(Pc)
    hh = (q % (Hp * Wp)) // Wp
    ww = q % Wp
    valid = (q < P) & (hh >= 1) & (hh <= H) & (ww >= 1) & (ww <= W)
    mask = jnp.asarray(valid.astype(np.float32)[None, :])                  # (1, Pc)

    # -- weights: (Cout, Cin, 3, 3) -> (Cout_pad, 9*Cin_pad), tap-major, bf16 for the MXU --
    def pack_w(w, co, cop, ci, cip):
        wq = jnp.zeros((cop, 3, 3, cip), f32)
        wq = wq.at[:co, :, :, :ci].set(jnp.transpose(w.astype(f32), (0, 2, 3, 1)))
        return wq.reshape(cop, 9 * cip).astype(bf16)

    w1p = pack_w(w1, Cmid, Cmp, Cin, Cp)
    w2p = pack_w(w2, Cout, Cop, Cmid, Cmp)

    def pack_affine(g, b, c, cpad):
        gp = jnp.ones((cpad, 1), f32).at[:c, 0].set(g.astype(f32))
        bp = jnp.zeros((cpad, 1), f32).at[:c, 0].set(b.astype(f32))
        return gp, bp

    g1p, b1p = pack_affine(g1, b1, Cmid, Cmp)
    g2p, b2p = pack_affine(g2, b2, Cout, Cop)

    # tap t = kh*3 + kw corresponds to a flat shift of (kh-1)*Wp + (kw-1) on the padded grid
    taps = tuple((kh - 1) * Wp + (kw - 1) for kh in range(3) for kw in range(3))

    kernel = functools.partial(_u_basicblock_kernel,
                               taps=taps, margin=margin, n_valid=N * H * W)

    out_flat = pl.pallas_call(
        kernel,
        out_shape=jax.ShapeDtypeStruct((Cop, Pc), f32),
        in_specs=[pl.BlockSpec(memory_space=pltpu.MemorySpace.VMEM)] * 8,
        out_specs=pl.BlockSpec(memory_space=pltpu.MemorySpace.VMEM),
        scratch_shapes=[
            pltpu.VMEM((9 * Cp, Pc), bf16),    # conv1 im2col patch (bf16: half the copy traffic)
            pltpu.VMEM((9 * Cmp, Pc), bf16),   # conv2 im2col patch
            pltpu.VMEM((Cmp, Pm), bf16),       # margined (zero-halo) intermediate
        ],
        # working set is < 1 MiB; default scoped VMEM limit is plenty (no explicit limit).
    )(xm, mask, w1p, g1p, b1p, w2p, g2p, b2p)

    # drop channel padding / grid padding, back to NCHW
    out = out_flat[:Cout, :P].reshape(Cout, N, Hp, Wp)[:, :, 1:1 + H, 1:1 + W]
    return jnp.transpose(out, (1, 0, 2, 3))


def torch_like_reference(x, w1, g1, b1, w2, g2, b2):
    """Pure-JAX full-f32 reference matching the PyTorch forward (training-mode BN)."""
    dn = ('NCHW', 'OIHW', 'NCHW')

    def conv(inp, w):
        return jax.lax.conv_general_dilated(
            inp, w, window_strides=(1, 1), padding=((1, 1), (1, 1)),
            dimension_numbers=dn, precision=jax.lax.Precision.HIGHEST)

    def bn(y, g, b):
        m = jnp.mean(y, axis=(0, 2, 3), keepdims=True)
        v = jnp.mean((y - m) ** 2, axis=(0, 2, 3), keepdims=True)
        return (y - m) / jnp.sqrt(v + EPS) * g.reshape(1, -1, 1, 1) + b.reshape(1, -1, 1, 1)

    y = jax.nn.relu(bn(conv(x, w1), g1, b1))
    return jax.nn.relu(bn(conv(y, w2), g2, b2))


if __name__ == "__main__":
    # U_BasicBlock(in_planes=4, mid_planes=8, out_planes=4, bias=False, bn=True)
    N, Cin, Cmid, Cout, H, W = 2, 4, 8, 4, 16, 16

    key = jax.random.PRNGKey(0)
    kx, kw1, kw2, kg1, kb1, kg2, kb2 = jax.random.split(key, 7)
    x = jax.random.normal(kx, (N, Cin, H, W), jnp.float32)
    w1 = jax.random.normal(kw1, (Cmid, Cin, 3, 3), jnp.float32) * 0.2
    w2 = jax.random.normal(kw2, (Cout, Cmid, 3, 3), jnp.float32) * 0.2
    g1 = 1.0 + 0.1 * jax.random.normal(kg1, (Cmid,), jnp.float32)
    b1 = 0.1 * jax.random.normal(kb1, (Cmid,), jnp.float32)
    g2 = 1.0 + 0.1 * jax.random.normal(kg2, (Cout,), jnp.float32)
    b2 = 0.1 * jax.random.normal(kb2, (Cout,), jnp.float32)

    out = jax.block_until_ready(u_basicblock_forward(x, w1, g1, b1, w2, g2, b2))
    ref = jax.block_until_ready(torch_like_reference(x, w1, g1, b1, w2, g2, b2))

    assert out.shape == (N, Cout, H, W), out.shape
    # Kernel feeds the MXU bf16 operands with f32 accumulation (per TPU perf guidance);
    # tolerance vs. the full-f32 reference is sized for bf16 input rounding.
    if not np.allclose(np.asarray(out), np.asarray(ref), rtol=2e-2, atol=2e-2):
        max_err = float(np.max(np.abs(np.asarray(out) - np.asarray(ref))))
        raise AssertionError(f"kernel mismatch vs reference, max abs err = {max_err}")

    print("KERNEL_OK")
</pallas_src>

<mosaic_0001>
module attributes {stable_mosaic.version = 11 : i64} {
  func.func @_u_basicblock_kernel(%arg0: memref<8x1024xbf16, #tpu.memory_space<vmem>>, %arg1: memref<1x768xf32, #tpu.memory_space<vmem>>, %arg2: memref<8x72xbf16, #tpu.memory_space<vmem>>, %arg3: memref<8x1xf32, #tpu.memory_space<vmem>>, %arg4: memref<8x1xf32, #tpu.memory_space<vmem>>, %arg5: memref<8x72xbf16, #tpu.memory_space<vmem>>, %arg6: memref<8x1xf32, #tpu.memory_space<vmem>>, %arg7: memref<8x1xf32, #tpu.memory_space<vmem>>, %arg8: memref<8x768xf32, #tpu.memory_space<vmem>>, %arg9: memref<72x768xbf16, #tpu.memory_space<vmem>>, %arg10: memref<72x768xbf16, #tpu.memory_space<vmem>>, %arg11: memref<8x1024xbf16, #tpu.memory_space<vmem>>) attributes {dimension_semantics = [], scalar_prefetch = 0 : i64, scratch_operands = 3 : i64, tpu.core_type = #tpu.core_type<tc>} {
    %c0 = arith.constant 0 : index
    %c0_0 = arith.constant 0 : index
    %0 = vector.load %arg1[%c0, %c0_0] : memref<1x768xf32, #tpu.memory_space<vmem>>, vector<1x768xf32>
    %c0_1 = arith.constant 0 : index
    %c109 = arith.constant 109 : index
    %1 = vector.load %arg0[%c0_1, %c109] : memref<8x1024xbf16, #tpu.memory_space<vmem>>, vector<8x768xbf16>
    %c0_2 = arith.constant 0 : index
    %c0_3 = arith.constant 0 : index
    %2 = vector.load %arg9[%c0_2, %c0_3] : memref<72x768xbf16, #tpu.memory_space<vmem>>, vector<8x768xbf16>
    tpu.vector_store %arg9[%c0_2, %c0_3], %1 {strides = array<i32>} : memref<72x768xbf16, #tpu.memory_space<vmem>>, vector<8x768xbf16>,
    %c0_4 = arith.constant 0 : index
    %c110 = arith.constant 110 : index
    %3 = vector.load %arg0[%c0_4, %c110] : memref<8x1024xbf16, #tpu.memory_space<vmem>>, vector<8x768xbf16>
    %c8 = arith.constant 8 : index
    %c0_5 = arith.constant 0 : index
    %4 = vector.load %arg9[%c8, %c0_5] : memref<72x768xbf16, #tpu.memory_space<vmem>>, vector<8x768xbf16>
    tpu.vector_store %arg9[%c8, %c0_5], %3 {strides = array<i32>} : memref<72x768xbf16, #tpu.memory_space<vmem>>, vector<8x768xbf16>,
    %c0_6 = arith.constant 0 : index
    %c111 = arith.constant 111 : index
    %5 = vector.load %arg0[%c0_6, %c111] : memref<8x1024xbf16, #tpu.memory_space<vmem>>, vector<8x768xbf16>
    %c16 = arith.constant 16 : index
    %c0_7 = arith.constant 0 : index
    %6 = vector.load %arg9[%c16, %c0_7] : memref<72x768xbf16, #tpu.memory_space<vmem>>, vector<8x768xbf16>
    tpu.vector_store %arg9[%c16, %c0_7], %5 {strides = array<i32>} : memref<72x768xbf16, #tpu.memory_space<vmem>>, vector<8x768xbf16>,
    %c0_8 = arith.constant 0 : index
    %c127 = arith.constant 127 : index
    %7 = vector.load %arg0[%c0_8, %c127] : memref<8x1024xbf16, #tpu.memory_space<vmem>>, vector<8x768xbf16>
    %c24 = arith.constant 24 : index
    %c0_9 = arith.constant 0 : index
    %8 = vector.load %arg9[%c24, %c0_9] : memref<72x768xbf16, #tpu.memory_space<vmem>>, vector<8x768xbf16>
    tpu.vector_store %arg9[%c24, %c0_9], %7 {strides = array<i32>} : memref<72x768xbf16, #tpu.memory_space<vmem>>, vector<8x768xbf16>,
    %c0_10 = arith.constant 0 : index
    %c128 = arith.constant 128 : index
    %9 = vector.load %arg0[%c0_10, %c128] : memref<8x1024xbf16, #tpu.memory_space<vmem>>, vector<8x768xbf16>
    %c32 = arith.constant 32 : index
    %c0_11 = arith.constant 0 : index
    %10 = vector.load %arg9[%c32, %c0_11] : memref<72x768xbf16, #tpu.memory_space<vmem>>, vector<8x768xbf16>
    tpu.vector_store %arg9[%c32, %c0_11], %9 {strides = array<i32>} : memref<72x768xbf16, #tpu.memory_space<vmem>>, vector<8x768xbf16>,
    %c0_12 = arith.constant 0 : index
    %c129 = arith.constant 129 : index
    %11 = vector.load %arg0[%c0_12, %c129] : memref<8x1024xbf16, #tpu.memory_space<vmem>>, vector<8x768xbf16>
    %c40 = arith.constant 40 : index
    %c0_13 = arith.constant 0 : index
    %12 = vector.load %arg9[%c40, %c0_13] : memref<72x768xbf16, #tpu.memory_space<vmem>>, vector<8x768xbf16>
    tpu.vector_store %arg9[%c40, %c0_13], %11 {strides = array<i32>} : memref<72x768xbf16, #tpu.memory_space<vmem>>, vector<8x768xbf16>,
    %c0_14 = arith.constant 0 : index
    %c145 = arith.constant 145 : index
    %13 = vector.load %arg0[%c0_14, %c145] : memref<8x1024xbf16, #tpu.memory_space<vmem>>, vector<8x768xbf16>
    %c48 = arith.constant 48 : index
    %c0_15 = arith.constant 0 : index
    %14 = vector.load %arg9[%c48, %c0_15] : memref<72x768xbf16, #tpu.memory_space<vmem>>, vector<8x768xbf16>
    tpu.vector_store %arg9[%c48, %c0_15], %13 {strides = array<i32>} : memref<72x768xbf16, #tpu.memory_space<vmem>>, vector<8x768xbf16>,
    %c0_16 = arith.constant 0 : index
    %c146 = arith.constant 146 : index
    %15 = vector.load %arg0[%c0_16, %c146] : memref<8x1024xbf16, #tpu.memory_space<vmem>>, vector<8x768xbf16>
    %c56 = arith.constant 56 : index
    %c0_17 = arith.constant 0 : index
    %16 = vector.load %arg9[%c56, %c0_17] : memref<72x768xbf16, #tpu.memory_space<vmem>>, vector<8x768xbf16>
    tpu.vector_store %arg9[%c56, %c0_17], %15 {strides = array<i32>} : memref<72x768xbf16, #tpu.memory_space<vmem>>, vector<8x768xbf16>,
    %c0_18 = arith.constant 0 : index
    %c147 = arith.constant 147 : index
    %17 = vector.load %arg0[%c0_18, %c147] : memref<8x1024xbf16, #tpu.memory_space<vmem>>, vector<8x768xbf16>
    %c64 = arith.constant 64 : index
    %c0_19 = arith.constant 0 : index
    %18 = vector.load %arg9[%c64, %c0_19] : memref<72x768xbf16, #tpu.memory_space<vmem>>, vector<8x768xbf16>
    tpu.vector_store %arg9[%c64, %c0_19], %17 {strides = array<i32>} : memref<72x768xbf16, #tpu.memory_space<vmem>>, vector<8x768xbf16>,
    %c0_20 = arith.constant 0 : index
    %c0_21 = arith.constant 0 : index
    %19 = vector.load %arg2[%c0_20, %c0_21] : memref<8x72xbf16, #tpu.memory_space<vmem>>, vector<8x72xbf16>
    %c0_22 = arith.constant 0 : index
    %c0_23 = arith.constant 0 : index
    %20 = vector.load %arg9[%c0_22, %c0_23] : memref<72x768xbf16, #tpu.memory_space<vmem>>, vector<72x768xbf16>
    %cst = arith.constant dense<0.000000e+00> : vector<8x768xf32>
    %21 = tpu.matmul %19, %20, %cst {dimension_numbers = #tpu.dot_dimension_numbers<[1], [0], [0], [1], [0, 0, 1, 1], [], []>} : vector<8x72xbf16>, vector<72x768xbf16>, vector<8x768xf32> -> vector<8x768xf32>
    %22 = vector.broadcast %0 : vector<1x768xf32> to vector<8x768xf32>
    %23 = arith.mulf %21, %22 : vector<8x768xf32>
    %cst_24 = arith.constant dense<0.000000e+00> : vector<8xf32>
    %24 = vector.multi_reduction <add>, %23, %cst_24 [1] : vector<8x768xf32> to vector<8xf32>
    %25 = vector.shape_cast %24 : vector<8xf32> to vector<8x1xf32>
    %cst_25 = arith.constant 0.001953125 : f32
    %26 = vector.broadcast %cst_25 : f32 to vector<8x1xf32>
    %27 = arith.mulf %25, %26 : vector<8x1xf32>
    %28 = arith.mulf %23, %23 : vector<8x768xf32>
    %cst_26 = arith.constant dense<0.000000e+00> : vector<8xf32>
    %29 = vector.multi_reduction <add>, %28, %cst_26 [1] : vector<8x768xf32> to vector<8xf32>
    %30 = vector.shape_cast %29 : vector<8xf32> to vector<8x1xf32>
    %cst_27 = arith.constant 0.001953125 : f32
    %31 = vector.broadcast %cst_27 : f32 to vector<8x1xf32>
    %32 = arith.mulf %30, %31 : vector<8x1xf32>
    %33 = arith.mulf %27, %27 : vector<8x1xf32>
    %34 = arith.subf %32, %33 : vector<8x1xf32>
    %c0_28 = arith.constant 0 : index
    %c0_29 = arith.constant 0 : index
    %35 = vector.load %arg3[%c0_28, %c0_29] : memref<8x1xf32, #tpu.memory_space<vmem>>, vector<8x1xf32>
    %cst_30 = arith.constant 9.99999974E-6 : f32
    %36 = vector.broadcast %cst_30 : f32 to vector<8x1xf32>
    %37 = arith.addf %34, %36 : vector<8x1xf32>
    %38 = math.rsqrt %37 : vector<8x1xf32>
    %39 = arith.mulf %35, %38 : vector<8x1xf32>
    %c0_31 = arith.constant 0 : index
    %c0_32 = arith.constant 0 : index
    %40 = vector.load %arg4[%c0_31, %c0_32] : memref<8x1xf32, #tpu.memory_space<vmem>>, vector<8x1xf32>
    %41 = arith.mulf %27, %39 : vector<8x1xf32>
    %42 = arith.subf %40, %41 : vector<8x1xf32>
    %43 = vector.broadcast %39 : vector<8x1xf32> to vector<8x768xf32>
    %44 = arith.mulf %21, %43 : vector<8x768xf32>
    %45 = vector.broadcast %42 : vector<8x1xf32> to vector<8x768xf32>
    %46 = arith.addf %44, %45 : vector<8x768xf32>
    %cst_33 = arith.constant 0.000000e+00 : f32
    %47 = vector.broadcast %cst_33 : f32 to vector<8x768xf32>
    %48 = arith.maximumf %46, %47 : vector<8x768xf32>
    %49 = vector.broadcast %0 : vector<1x768xf32> to vector<8x768xf32>
    %50 = arith.mulf %48, %49 : vector<8x768xf32>
    %cst_34 = arith.constant 0.000000e+00 : bf16
    %51 = vector.broadcast %cst_34 : bf16 to vector<8x128xbf16>
    %c0_35 = arith.constant 0 : index
    %c0_36 = arith.constant 0 : index
    %52 = vector.load %arg11[%c0_35, %c0_36] : memref<8x1024xbf16, #tpu.memory_space<vmem>>, vector<8x128xbf16>
    tpu.vector_store %arg11[%c0_35, %c0_36], %51 {strides = array<i32>} : memref<8x1024xbf16, #tpu.memory_space<vmem>>, vector<8x128xbf16>,
    %c0_37 = arith.constant 0 : index
    %c896 = arith.constant 896 : index
    %53 = vector.load %arg11[%c0_37, %c896] : memref<8x1024xbf16, #tpu.memory_space<vmem>>, vector<8x128xbf16>
    tpu.vector_store %arg11[%c0_37, %c896], %51 {strides = array<i32>} : memref<8x1024xbf16, #tpu.memory_space<vmem>>, vector<8x128xbf16>,
    %54 = arith.truncf %50 : vector<8x768xf32> to vector<8x768xbf16>
    %c0_38 = arith.constant 0 : index
    %c128_39 = arith.constant 128 : index
    %55 = vector.load %arg11[%c0_38, %c128_39] : memref<8x1024xbf16, #tpu.memory_space<vmem>>, vector<8x768xbf16>
    tpu.vector_store %arg11[%c0_38, %c128_39], %54 {strides = array<i32>} : memref<8x1024xbf16, #tpu.memory_space<vmem>>, vector<8x768xbf16>,
    %c0_40 = arith.constant 0 : index
    %c109_41 = arith.constant 109 : index
    %56 = vector.load %arg11[%c0_40, %c109_41] : memref<8x1024xbf16, #tpu.memory_space<vmem>>, vector<8x768xbf16>
    %c0_42 = arith.constant 0 : index
    %c0_43 = arith.constant 0 : index
    %57 = vector.load %arg10[%c0_42, %c0_43] : memref<72x768xbf16, #tpu.memory_space<vmem>>, vector<8x768xbf16>
    tpu.vector_store %arg10[%c0_42, %c0_43], %56 {strides = array<i32>} : memref<72x768xbf16, #tpu.memory_space<vmem>>, vector<8x768xbf16>,
    %c0_44 = arith.constant 0 : index
    %c110_45 = arith.constant 110 : index
    %58 = vector.load %arg11[%c0_44, %c110_45] : memref<8x1024xbf16, #tpu.memory_space<vmem>>, vector<8x768xbf16>
    %c8_46 = arith.constant 8 : index
    %c0_47 = arith.constant 0 : index
    %59 = vector.load %arg10[%c8_46, %c0_47] : memref<72x768xbf16, #tpu.memory_space<vmem>>, vector<8x768xbf16>
    tpu.vector_store %arg10[%c8_46, %c0_47], %58 {strides = array<i32>} : memref<72x768xbf16, #tpu.memory_space<vmem>>, vector<8x768xbf16>,
    %c0_48 = arith.constant 0 : index
    %c111_49 = arith.constant 111 : index
    %60 = vector.load %arg11[%c0_48, %c111_49] : memref<8x1024xbf16, #tpu.memory_space<vmem>>, vector<8x768xbf16>
    %c16_50 = arith.constant 16 : index
    %c0_51 = arith.constant 0 : index
    %61 = vector.load %arg10[%c16_50, %c0_51] : memref<72x768xbf16, #tpu.memory_space<vmem>>, vector<8x768xbf16>
    tpu.vector_store %arg10[%c16_50, %c0_51], %60 {strides = array<i32>} : memref<72x768xbf16, #tpu.memory_space<vmem>>, vector<8x768xbf16>,
    %c0_52 = arith.constant 0 : index
    %c127_53 = arith.constant 127 : index
    %62 = vector.load %arg11[%c0_52, %c127_53] : memref<8x1024xbf16, #tpu.memory_space<vmem>>, vector<8x768xbf16>
    %c24_54 = arith.constant 24 : index
    %c0_55 = arith.constant 0 : index
    %63 = vector.load %arg10[%c24_54, %c0_55] : memref<72x768xbf16, #tpu.memory_space<vmem>>, vector<8x768xbf16>
    tpu.vector_store %arg10[%c24_54, %c0_55], %62 {strides = array<i32>} : memref<72x768xbf16, #tpu.memory_space<vmem>>, vector<8x768xbf16>,
    %c0_56 = arith.constant 0 : index
    %c128_57 = arith.constant 128 : index
    %64 = vector.load %arg11[%c0_56, %c128_57] : memref<8x1024xbf16, #tpu.memory_space<vmem>>, vector<8x768xbf16>
    %c32_58 = arith.constant 32 : index
    %c0_59 = arith.constant 0 : index
    %65 = vector.load %arg10[%c32_58, %c0_59] : memref<72x768xbf16, #tpu.memory_space<vmem>>, vector<8x768xbf16>
    tpu.vector_store %arg10[%c32_58, %c0_59], %64 {strides = array<i32>} : memref<72x768xbf16, #tpu.memory_space<vmem>>, vector<8x768xbf16>,
    %c0_60 = arith.constant 0 : index
    %c129_61 = arith.constant 129 : index
    %66 = vector.load %arg11[%c0_60, %c129_61] : memref<8x1024xbf16, #tpu.memory_space<vmem>>, vector<8x768xbf16>
    %c40_62 = arith.constant 40 : index
    %c0_63 = arith.constant 0 : index
    %67 = vector.load %arg10[%c40_62, %c0_63] : memref<72x768xbf16, #tpu.memory_space<vmem>>, vector<8x768xbf16>
    tpu.vector_store %arg10[%c40_62, %c0_63], %66 {strides = array<i32>} : memref<72x768xbf16, #tpu.memory_space<vmem>>, vector<8x768xbf16>,
    %c0_64 = arith.constant 0 : index
    %c145_65 = arith.constant 145 : index
    %68 = vector.load %arg11[%c0_64, %c145_65] : memref<8x1024xbf16, #tpu.memory_space<vmem>>, vector<8x768xbf16>
    %c48_66 = arith.constant 48 : index
    %c0_67 = arith.constant 0 : index
    %69 = vector.load %arg10[%c48_66, %c0_67] : memref<72x768xbf16, #tpu.memory_space<vmem>>, vector<8x768xbf16>
    tpu.vector_store %arg10[%c48_66, %c0_67], %68 {strides = array<i32>} : memref<72x768xbf16, #tpu.memory_space<vmem>>, vector<8x768xbf16>,
    %c0_68 = arith.constant 0 : index
    %c146_69 = arith.constant 146 : index
    %70 = vector.load %arg11[%c0_68, %c146_69] : memref<8x1024xbf16, #tpu.memory_space<vmem>>, vector<8x768xbf16>
    %c56_70 = arith.constant 56 : index
    %c0_71 = arith.constant 0 : index
    %71 = vector.load %arg10[%c56_70, %c0_71] : memref<72x768xbf16, #tpu.memory_space<vmem>>, vector<8x768xbf16>
    tpu.vector_store %arg10[%c56_70, %c0_71], %70 {strides = array<i32>} : memref<72x768xbf16, #tpu.memory_space<vmem>>, vector<8x768xbf16>,
    %c0_72 = arith.constant 0 : index
    %c147_73 = arith.constant 147 : index
    %72 = vector.load %arg11[%c0_72, %c147_73] : memref<8x1024xbf16, #tpu.memory_space<vmem>>, vector<8x768xbf16>
    %c64_74 = arith.constant 64 : index
    %c0_75 = arith.constant 0 : index
    %73 = vector.load %arg10[%c64_74, %c0_75] : memref<72x768xbf16, #tpu.memory_space<vmem>>, vector<8x768xbf16>
    tpu.vector_store %arg10[%c64_74, %c0_75], %72 {strides = array<i32>} : memref<72x768xbf16, #tpu.memory_space<vmem>>, vector<8x768xbf16>,
    %c0_76 = arith.constant 0 : index
    %c0_77 = arith.constant 0 : index
    %74 = vector.load %arg5[%c0_76, %c0_77] : memref<8x72xbf16, #tpu.memory_space<vmem>>, vector<8x72xbf16>
    %c0_78 = arith.constant 0 : index
    %c0_79 = arith.constant 0 : index
    %75 = vector.load %arg10[%c0_78, %c0_79] : memref<72x768xbf16, #tpu.memory_space<vmem>>, vector<72x768xbf16>
    %cst_80 = arith.constant dense<0.000000e+00> : vector<8x768xf32>
    %76 = tpu.matmul %74, %75, %cst_80 {dimension_numbers = #tpu.dot_dimension_numbers<[1], [0], [0], [1], [0, 0, 1, 1], [], []>} : vector<8x72xbf16>, vector<72x768xbf16>, vector<8x768xf32> -> vector<8x768xf32>
    %77 = vector.broadcast %0 : vector<1x768xf32> to vector<8x768xf32>
    %78 = arith.mulf %76, %77 : vector<8x768xf32>
    %cst_81 = arith.constant dense<0.000000e+00> : vector<8xf32>
    %79 = vector.multi_reduction <add>, %78, %cst_81 [1] : vector<8x768xf32> to vector<8xf32>
    %80 = vector.shape_cast %79 : vector<8xf32> to vector<8x1xf32>
    %cst_82 = arith.constant 0.001953125 : f32
    %81 = vector.broadcast %cst_82 : f32 to vector<8x1xf32>
    %82 = arith.mulf %80, %81 : vector<8x1xf32>
    %83 = arith.mulf %78, %78 : vector<8x768xf32>
    %cst_83 = arith.constant dense<0.000000e+00> : vector<8xf32>
    %84 = vector.multi_reduction <add>, %83, %cst_83 [1] : vector<8x768xf32> to vector<8xf32>
    %85 = vector.shape_cast %84 : vector<8xf32> to vector<8x1xf32>
    %cst_84 = arith.constant 0.001953125 : f32
    %86 = vector.broadcast %cst_84 : f32 to vector<8x1xf32>
    %87 = arith.mulf %85, %86 : vector<8x1xf32>
    %88 = arith.mulf %82, %82 : vector<8x1xf32>
    %89 = arith.subf %87, %88 : vector<8x1xf32>
    %c0_85 = arith.constant 0 : index
    %c0_86 = arith.constant 0 : index
    %90 = vector.load %arg6[%c0_85, %c0_86] : memref<8x1xf32, #tpu.memory_space<vmem>>, vector<8x1xf32>
    %cst_87 = arith.constant 9.99999974E-6 : f32
    %91 = vector.broadcast %cst_87 : f32 to vector<8x1xf32>
    %92 = arith.addf %89, %91 : vector<8x1xf32>
    %93 = math.rsqrt %92 : vector<8x1xf32>
    %94 = arith.mulf %90, %93 : vector<8x1xf32>
    %c0_88 = arith.constant 0 : index
    %c0_89 = arith.constant 0 : index
    %95 = vector.load %arg7[%c0_88, %c0_89] : memref<8x1xf32, #tpu.memory_space<vmem>>, vector<8x1xf32>
    %96 = arith.mulf %82, %94 : vector<8x1xf32>
    %97 = arith.subf %95, %96 : vector<8x1xf32>
    %98 = vector.broadcast %94 : vector<8x1xf32> to vector<8x768xf32>
    %99 = arith.mulf %76, %98 : vector<8x768xf32>
    %100 = vector.broadcast %97 : vector<8x1xf32> to vector<8x768xf32>
    %101 = arith.addf %99, %100 : vector<8x768xf32>
    %cst_90 = arith.constant 0.000000e+00 : f32
    %102 = vector.broadcast %cst_90 : f32 to vector<8x768xf32>
    %103 = arith.maximumf %101, %102 : vector<8x768xf32>
    %c0_91 = arith.constant 0 : index
    %c0_92 = arith.constant 0 : index
    %104 = vector.load %arg8[%c0_91, %c0_92] : memref<8x768xf32, #tpu.memory_space<vmem>>, vector<8x768xf32>
    tpu.vector_store %arg8[%c0_91, %c0_92], %103 {strides = array<i32>} : memref<8x768xf32, #tpu.memory_space<vmem>>, vector<8x768xf32>,
    return
  }
}

</mosaic_0001>

<llo_original>
// kernel: tpu_custom_call.1
$region0: #{tpu_custom_call.1}
  #allocation0 [shape = 'u32[]', space=smem, size = 0x4, offset = 0x4, fixed_abs, tag = 'smem constant byte address 0x4 - core index']
  #allocation1 [shape = 'u32[144,128]{1,0:T(1,128)}', space=vmem, size = 0x12000, scoped, tag = 'internal scratch']
  #allocation2 [shape = 'bf16[72,768]{1,0:T(8,128)(2,1)}', space=vmem, size = 0x1b000, scoped, tag = 'scratch operand']
  #allocation3 [shape = 'bf16[72,768]{1,0:T(8,128)(2,1)}', space=vmem, size = 0x1b000, scoped, tag = 'scratch operand']
  #allocation4 [shape = 'bf16[8,1024]{1,0:T(8,128)(2,1)}', space=vmem, size = 0x4000, scoped, tag = 'scratch operand']
  %s0 = inlined_call_operand.vmem [shape: bf16[8,1024], index: 0, kind: input, shape index: {}]
  %s1 = inlined_call_operand.vmem [shape: f32[1,768], index: 1, kind: input, shape index: {}]
  %s2 = inlined_call_operand.vmem [shape: bf16[8,72], index: 2, kind: input, shape index: {}]
  %s3 = inlined_call_operand.vmem [shape: f32[8,1], index: 3, kind: input, shape index: {}]
  %s4 = inlined_call_operand.vmem [shape: f32[8,1], index: 4, kind: input, shape index: {}]
  %s5 = inlined_call_operand.vmem [shape: bf16[8,72], index: 5, kind: input, shape index: {}]
  %s6 = inlined_call_operand.vmem [shape: f32[8,1], index: 6, kind: input, shape index: {}]
  %s7 = inlined_call_operand.vmem [shape: f32[8,1], index: 7, kind: input, shape index: {}]
  %s8 = inlined_call_operand.hbm [shape: f32[8,768], index: 8, kind: output, shape index: {}]
  %s9 = sld [smem:[#allocation0]]
  $region42: #{tpu_custom_call.1} parent=0
    _
  %s11 = ssub.s32 1, %s9
  %s12 = scalar_select 0, %s11, %s9
  $region1: #{tpu_custom_call.1} parent=0
    #allocation5 [shape = 'u8[24576]{0}', space=vmem, size = 0x6000, scoped, tag = 'output window, operand 0, single buffered']
    #allocation6 [shape = 's32[1]{0}', space=sflag, size = 0x4, scoped, tag = 'scoped memory for tpu_custom_call.1']
    %13 = vsyncpa [#allocation6], 0
    // Predicated region
    $region2: #{tpu_custom_call.1} parent=1 // pred_check
      _
    $region3: #{tpu_custom_call.1} parent=1 // pred_check_branch
      %15 = sbr.rel (0) target = $region5
    $region4: #{tpu_custom_call.1} parent=1 // pred_region
      _
    $region5: #{tpu_custom_call.1} parent=1 // pred_fallthru
      _
    // Predicated region
    $region6: #{tpu_custom_call.1} parent=1 // pred_check
      _
    $region7: #{tpu_custom_call.1} parent=1 // pred_check_branch
      %17 = sbr.rel (0) target = $region9
    $region8: #{tpu_custom_call.1} parent=1 // pred_region
      _
    $region9: #{tpu_custom_call.1} parent=1 // pred_fallthru
      _
    // Predicated region
    $region10: #{tpu_custom_call.1} parent=1 // pred_check
      _
    $region11: #{tpu_custom_call.1} parent=1 // pred_check_branch
      %19 = sbr.rel (0) target = $region13
    $region12: #{tpu_custom_call.1} parent=1 // pred_region
      _
    $region13: #{tpu_custom_call.1} parent=1 // pred_fallthru
      _
    // Predicated region
    $region14: #{tpu_custom_call.1} parent=1 // pred_check
      _
    $region15: #{tpu_custom_call.1} parent=1 // pred_check_branch
      %21 = sbr.rel (0) target = $region17
    $region16: #{tpu_custom_call.1} parent=1 // pred_region
      _
    $region17: #{tpu_custom_call.1} parent=1 // pred_fallthru
      _
    // Predicated region
    $region18: #{tpu_custom_call.1} parent=1 // pred_check
      _
    $region19: #{tpu_custom_call.1} parent=1 // pred_check_branch
      %23 = sbr.rel (0) target = $region21
    $region20: #{tpu_custom_call.1} parent=1 // pred_region
      _
    $region21: #{tpu_custom_call.1} parent=1 // pred_fallthru
      _
    // Predicated region
    $region22: #{tpu_custom_call.1} parent=1 // pred_check
      _
    $region23: #{tpu_custom_call.1} parent=1 // pred_check_branch
      %25 = sbr.rel (0) target = $region25
    $region24: #{tpu_custom_call.1} parent=1 // pred_region
      _
    $region25: #{tpu_custom_call.1} parent=1 // pred_fallthru
      _
    // Predicated region
    $region26: #{tpu_custom_call.1} parent=1 // pred_check
      _
    $region27: #{tpu_custom_call.1} parent=1 // pred_check_branch
      %27 = sbr.rel (0) target = $region29
    $region28: #{tpu_custom_call.1} parent=1 // pred_region
      _
    $region29: #{tpu_custom_call.1} parent=1 // pred_fallthru
      _
    // Predicated region
    $region30: #{tpu_custom_call.1} parent=1 // pred_check
      _
    $region31: #{tpu_custom_call.1} parent=1 // pred_check_branch
      %29 = sbr.rel (0) target = $region33
    $region32: #{tpu_custom_call.1} parent=1 // pred_region
      _
    $region33: #{tpu_custom_call.1} parent=1 // pred_fallthru
      _
    %v31 = vld [vmem:[%s1] sm:$0x3f]
    %v32 = vld [vmem:[%s0] sm:$0xff]
    %v33 = vld [vmem:[%s0 + $0x8] sm:$0xff]
    %v34 = vld [vmem:[%s0 + $0x10] sm:$0xff]
    %v35 = vld [vmem:[%s0 + $0x18] sm:$0xf]
    %40 = vrot.lane.b32.xlu0 %v32, 19
    %v41 = vpop.permute.xlu0 %40
    %42 = vrot.lane.b32.xlu0 %v33, 19
    %v43 = vpop.permute.xlu0 %42
    %44 = vrot.lane.b32.xlu0 %v34, 19
    %v45 = vpop.permute.xlu0 %44
    %46 = vrot.lane.b32.xlu0 %v35, 19
    %v47 = vpop.permute.xlu0 %46
    %v48 = vrot.slane %v41, 4
    %v49 = vrot.slane %v43, 4
    %v50 = vrot.slane %v45, 4
    %v51 = vrot.slane %v47, 4
    %vm52 = vcmask 1043456
    %v53 = vsel %vm52, %v48, %v49
    %vm54 = vcmask 154624
    %v55 = vsel %vm54, %v41, %v53
    %v56 = vsel %vm52, %v49, %v50
    %v57 = vsel %vm54, %v43, %v56
    %v58 = vsel %vm52, %v50, %v51
    %v59 = vsel %vm54, %v45, %v58
    %63 = vst [vmem:[#allocation2] sm:$0xff] %v55
    %64 = vst [vmem:[#allocation2 + $0x8] sm:$0xff] %v57
    %65 = vst [vmem:[#allocation2 + $0x10] sm:$0xff] %v59
    %v66 = vld [vmem:[%s0] sm:$0xff]
    %v67 = vld [vmem:[%s0 + $0x8] sm:$0xff]
    %v68 = vld [vmem:[%s0 + $0x10] sm:$0xff]
    %v69 = vld [vmem:[%s0 + $0x18] sm:$0xf]
    %74 = vrot.lane.b32.xlu0 %v66, 18
    %v75 = vpop.permute.xlu0 %74
    %76 = vrot.lane.b32.xlu0 %v67, 18
    %v77 = vpop.permute.xlu0 %76
    %78 = vrot.lane.b32.xlu0 %v68, 18
    %v79 = vpop.permute.xlu0 %78
    %80 = vrot.lane.b32.xlu0 %v69, 18
    %v81 = vpop.permute.xlu0 %80
    %v82 = vrot.slane %v75, 4
    %v83 = vrot.slane %v77, 4
    %v84 = vrot.slane %v79, 4
    %v85 = vrot.slane %v81, 4
    %v86 = vsel %vm52, %v82, %v83
    %vm87 = vcmask 146432
    %v88 = vsel %vm87, %v75, %v86
    %v89 = vsel %vm52, %v83, %v84
    %v90 = vsel %vm87, %v77, %v89
    %v91 = vsel %vm52, %v84, %v85
    %v92 = vsel %vm87, %v79, %v91
    %96 = vst [vmem:[#allocation2 + $0x18] sm:$0xff] %v88
    %97 = vst [vmem:[#allocation2 + $0x20] sm:$0xff] %v90
    %98 = vst [vmem:[#allocation2 + $0x28] sm:$0xff] %v92
    %v99 = vld [vmem:[%s0] sm:$0xff]
    %v100 = vld [vmem:[%s0 + $0x8] sm:$0xff]
    %v101 = vld [vmem:[%s0 + $0x10] sm:$0xff]
    %v102 = vld [vmem:[%s0 + $0x18] sm:$0xf]
    %107 = vrot.lane.b32.xlu0 %v99, 17
    %v108 = vpop.permute.xlu0 %107
    %109 = vrot.lane.b32.xlu0 %v100, 17
    %v110 = vpop.permute.xlu0 %109
    %111 = vrot.lane.b32.xlu0 %v101, 17
    %v112 = vpop.permute.xlu0 %111
    %113 = vrot.lane.b32.xlu0 %v102, 17
    %v114 = vpop.permute.xlu0 %113
    %v115 = vrot.slane %v108, 4
    %v116 = vrot.slane %v110, 4
    %v117 = vrot.slane %v112, 4
    %v118 = vrot.slane %v114, 4
    %v119 = vsel %vm52, %v115, %v116
    %vm120 = vcmask 138240
    %v121 = vsel %vm120, %v108, %v119
    %v122 = vsel %vm52, %v116, %v117
    %v123 = vsel %vm120, %v110, %v122
    %v124 = vsel %vm52, %v117, %v118
    %v125 = vsel %vm120, %v112, %v124
    %129 = vst [vmem:[#allocation2 + $0x30] sm:$0xff] %v121
    %130 = vst [vmem:[#allocation2 + $0x38] sm:$0xff] %v123
    %131 = vst [vmem:[#allocation2 + $0x40] sm:$0xff] %v125
    %v132 = vld [vmem:[%s0] sm:$0xff]
    %v133 = vld [vmem:[%s0 + $0x8] sm:$0xff]
    %v134 = vld [vmem:[%s0 + $0x10] sm:$0xff]
    %v135 = vld [vmem:[%s0 + $0x18] sm:$0xf]
    %140 = vrot.lane.b32.xlu0 %v132, 1
    %v141 = vpop.permute.xlu0 %140
    %142 = vrot.lane.b32.xlu0 %v133, 1
    %v143 = vpop.permute.xlu0 %142
    %144 = vrot.lane.b32.xlu0 %v134, 1
    %v145 = vpop.permute.xlu0 %144
    %146 = vrot.lane.b32.xlu0 %v135, 1
    %v147 = vpop.permute.xlu0 %146
    %v148 = vrot.slane %v141, 4
    %v149 = vrot.slane %v143, 4
    %v150 = vrot.slane %v145, 4
    %v151 = vrot.slane %v147, 4
    %v152 = vsel %vm52, %v148, %v149
    %vm153 = vcmask 7168
    %v154 = vsel %vm153, %v141, %v152
    %v155 = vsel %vm52, %v149, %v150
    %v156 = vsel %vm153, %v143, %v155
    %v157 = vsel %vm52, %v150, %v151
    %v158 = vsel %vm153, %v145, %v157
    %162 = vst [vmem:[#allocation2 + $0x48] sm:$0xff] %v154
    %163 = vst [vmem:[#allocation2 + $0x50] sm:$0xff] %v156
    %164 = vst [vmem:[#allocation2 + $0x58] sm:$0xff] %v158
    %v165 = vld [vmem:[%s0 + $0x4] sm:$0xff]
    %v166 = vld [vmem:[%s0 + $0xc] sm:$0xff]
    %v167 = vld [vmem:[%s0 + $0x14] sm:$0xff]
    %168 = vst [vmem:[#allocation2 + $0x60] sm:$0xff] %v165
    %169 = vst [vmem:[#allocation2 + $0x68] sm:$0xff] %v166
    %170 = vst [vmem:[#allocation2 + $0x70] sm:$0xff] %v167
    %v171 = vld [vmem:[%s0 + $0x4] sm:$0xff]
    %v172 = vld [vmem:[%s0 + $0xc] sm:$0xff]
    %v173 = vld [vmem:[%s0 + $0x14] sm:$0xff]
    %v174 = vld [vmem:[%s0 + $0x1c] sm:$0xf]
    %179 = vrot.lane.b32.xlu0 %v171, 127
    %v180 = vpop.permute.xlu0 %179
    %181 = vrot.lane.b32.xlu0 %v172, 127
    %v182 = vpop.permute.xlu0 %181
    %183 = vrot.lane.b32.xlu0 %v173, 127
    %v184 = vpop.permute.xlu0 %183
    %185 = vrot.lane.b32.xlu0 %v174, 127
    %v186 = vpop.permute.xlu0 %185
    %v187 = vrot.slane %v180, 4
    %v188 = vrot.slane %v182, 4
    %v189 = vrot.slane %v184, 4
    %v190 = vrot.slane %v186, 4
    %v191 = vsel %vm52, %v187, %v188
    %vm192 = vcmask 1039360
    %v193 = vsel %vm192, %v180, %v191
    %v194 = vsel %vm52, %v188, %v189
    %v195 = vsel %vm192, %v182, %v194
    %v196 = vsel %vm52, %v189, %v190
    %v197 = vsel %vm192, %v184, %v196
    %201 = vst [vmem:[#allocation2 + $0x78] sm:$0xff] %v193
    %202 = vst [vmem:[#allocation2 + $0x80] sm:$0xff] %v195
    %203 = vst [vmem:[#allocation2 + $0x88] sm:$0xff] %v197
    %v204 = vld [vmem:[%s0 + $0x4] sm:$0xff]
    %v205 = vld [vmem:[%s0 + $0xc] sm:$0xff]
    %v206 = vld [vmem:[%s0 + $0x14] sm:$0xff]
    %v207 = vld [vmem:[%s0 + $0x1c] sm:$0xf]
    %212 = vrot.lane.b32.xlu0 %v204, 111
    %v213 = vpop.permute.xlu0 %212
    %214 = vrot.lane.b32.xlu0 %v205, 111
    %v215 = vpop.permute.xlu0 %214
    %216 = vrot.lane.b32.xlu0 %v206, 111
    %v217 = vpop.permute.xlu0 %216
    %218 = vrot.lane.b32.xlu0 %v207, 111
    %v219 = vpop.permute.xlu0 %218
    %v220 = vrot.slane %v213, 4
    %v221 = vrot.slane %v215, 4
    %v222 = vrot.slane %v217, 4
    %v223 = vrot.slane %v219, 4
    %v224 = vsel %vm52, %v220, %v221
    %vm225 = vcmask 908288
    %v226 = vsel %vm225, %v213, %v224
    %v227 = vsel %vm52, %v221, %v222
    %v228 = vsel %vm225, %v215, %v227
    %v229 = vsel %vm52, %v222, %v223
    %v230 = vsel %vm225, %v217, %v229
    %234 = vst [vmem:[#allocation2 + $0x90] sm:$0xff] %v226
    %235 = vst [vmem:[#allocation2 + $0x98] sm:$0xff] %v228
    %236 = vst [vmem:[#allocation2 + $0xa0] sm:$0xff] %v230
    %v237 = vld [vmem:[%s0 + $0x4] sm:$0xff]
    %v238 = vld [vmem:[%s0 + $0xc] sm:$0xff]
    %v239 = vld [vmem:[%s0 + $0x14] sm:$0xff]
    %v240 = vld [vmem:[%s0 + $0x1c] sm:$0xf]
    %245 = vrot.lane.b32.xlu0 %v237, 110
    %v246 = vpop.permute.xlu0 %245
    %247 = vrot.lane.b32.xlu0 %v238, 110
    %v248 = vpop.permute.xlu0 %247
    %249 = vrot.lane.b32.xlu0 %v239, 110
    %v250 = vpop.permute.xlu0 %249
    %251 = vrot.lane.b32.xlu0 %v240, 110
    %v252 = vpop.permute.xlu0 %251
    %v253 = vrot.slane %v246, 4
    %v254 = vrot.slane %v248, 4
    %v255 = vrot.slane %v250, 4
    %v256 = vrot.slane %v252, 4
    %v257 = vsel %vm52, %v253, %v254
    %vm258 = vcmask 900096
    %v259 = vsel %vm258, %v246, %v257
    %v260 = vsel %vm52, %v254, %v255
    %v261 = vsel %vm258, %v248, %v260
    %v262 = vsel %vm52, %v255, %v256
    %v263 = vsel %vm258, %v250, %v262
    %267 = vst [vmem:[#allocation2 + $0xa8] sm:$0xff] %v259
    %268 = vst [vmem:[#allocation2 + $0xb0] sm:$0xff] %v261
    %269 = vst [vmem:[#allocation2 + $0xb8] sm:$0xff] %v263
    %v270 = vld [vmem:[%s0 + $0x4] sm:$0xff]
    %v271 = vld [vmem:[%s0 + $0xc] sm:$0xff]
    %v272 = vld [vmem:[%s0 + $0x14] sm:$0xff]
    %v273 = vld [vmem:[%s0 + $0x1c] sm:$0xf]
    %278 = vrot.lane.b32.xlu0 %v270, 109
    %v279 = vpop.permute.xlu0 %278
    %280 = vrot.lane.b32.xlu0 %v271, 109
    %v281 = vpop.permute.xlu0 %280
    %282 = vrot.lane.b32.xlu0 %v272, 109
    %v283 = vpop.permute.xlu0 %282
    %284 = vrot.lane.b32.xlu0 %v273, 109
    %v285 = vpop.permute.xlu0 %284
    %v286 = vrot.slane %v279, 4
    %v287 = vrot.slane %v281, 4
    %v288 = vrot.slane %v283, 4
    %v289 = vrot.slane %v285, 4
    %v290 = vsel %vm52, %v286, %v287
    %vm291 = vcmask 891904
    %v292 = vsel %vm291, %v279, %v290
    %v293 = vsel %vm52, %v287, %v288
    %v294 = vsel %vm291, %v281, %v293
    %v295 = vsel %vm52, %v288, %v289
    %v296 = vsel %vm291, %v283, %v295
    %300 = vst [vmem:[#allocation2 + $0xc0] sm:$0xff] %v292
    %301 = vst [vmem:[#allocation2 + $0xc8] sm:$0xff] %v294
    %302 = vst [vmem:[#allocation2 + $0xd0] sm:$0xff] %v296
    %v303 = vld [vmem:[%s2] sm:$0xf]
    %v304 = vld [vmem:[#allocation2] sm:$0xff]
    %v305 = vld [vmem:[#allocation2 + $0x8] sm:$0xff]
    %v306 = vld [vmem:[#allocation2 + $0x10] sm:$0xff]
    %v307 = vld [vmem:[#allocation2 + $0x18] sm:$0xff]
    %v308 = vld [vmem:[#allocation2 + $0x20] sm:$0xff]
    %v309 = vld [vmem:[#allocation2 + $0x28] sm:$0xff]
    %v310 = vld [vmem:[#allocation2 + $0x30] sm:$0xff]
    %v311 = vld [vmem:[#allocation2 + $0x38] sm:$0xff]
    %v312 = vld [vmem:[#allocation2 + $0x40] sm:$0xff]
    %v313 = vld [vmem:[#allocation2 + $0x48] sm:$0xff]
    %v314 = vld [vmem:[#allocation2 + $0x50] sm:$0xff]
    %v315 = vld [vmem:[#allocation2 + $0x58] sm:$0xff]
    %v316 = vld [vmem:[#allocation2 + $0x60] sm:$0xff]
    %v317 = vld [vmem:[#allocation2 + $0x68] sm:$0xff]
    %v318 = vld [vmem:[#allocation2 + $0x70] sm:$0xff]
    %v319 = vld [vmem:[#allocation2 + $0x78] sm:$0xff]
    %v320 = vld [vmem:[#allocation2 + $0x80] sm:$0xff]
    %v321 = vld [vmem:[#allocation2 + $0x88] sm:$0xff]
    %v322 = vld [vmem:[#allocation2 + $0x90] sm:$0xff]
    %v323 = vld [vmem:[#allocation2 + $0x98] sm:$0xff]
    %v324 = vld [vmem:[#allocation2 + $0xa0] sm:$0xff]
    %v325 = vld [vmem:[#allocation2 + $0xa8] sm:$0xff]
    %v326 = vld [vmem:[#allocation2 + $0xb0] sm:$0xff]
    %v327 = vld [vmem:[#allocation2 + $0xb8] sm:$0xff]
    %v328 = vld [vmem:[#allocation2 + $0xc0] sm:$0xff]
    %v329 = vld [vmem:[#allocation2 + $0xc8] sm:$0xff]
    %v330 = vld [vmem:[#allocation2 + $0xd0] sm:$0xff]
    %v358 = vunpack.c.l.b16 %v304
    %v359 = vunpack.c.h.b16 %v304
    %v360 = vunpack.c.l.b16 %v305
    %v361 = vunpack.c.h.b16 %v305
    %v362 = vunpack.c.l.b16 %v306
    %v363 = vunpack.c.h.b16 %v306
    %v364 = vunpack.c.l.b16 %v307
    %v365 = vunpack.c.h.b16 %v307
    %v366 = vunpack.c.l.b16 %v308
    %v367 = vunpack.c.h.b16 %v308
    %v368 = vunpack.c.l.b16 %v309
    %v369 = vunpack.c.h.b16 %v309
    %v370 = vunpack.c.l.b16 %v310
    %v371 = vunpack.c.h.b16 %v310
    %v372 = vunpack.c.l.b16 %v311
    %v373 = vunpack.c.h.b16 %v311
    %v374 = vunpack.c.l.b16 %v312
    %v375 = vunpack.c.h.b16 %v312
    %v376 = vunpack.c.l.b16 %v313
    %v377 = vunpack.c.h.b16 %v313
    %v378 = vunpack.c.l.b16 %v314
    %v379 = vunpack.c.h.b16 %v314
    %v380 = vunpack.c.l.b16 %v315
    %v381 = vunpack.c.h.b16 %v315
    %v382 = vunpack.c.l.b16 %v316
    %v383 = vunpack.c.h.b16 %v316
    %v384 = vunpack.c.l.b16 %v317
    %v385 = vunpack.c.h.b16 %v317
    %v386 = vunpack.c.l.b16 %v318
    %v387 = vunpack.c.h.b16 %v318
    %v388 = vunpack.c.l.b16 %v319
    %v389 = vunpack.c.h.b16 %v319
    %v390 = vunpack.c.l.b16 %v320
    %v391 = vunpack.c.h.b16 %v320
    %v392 = vunpack.c.l.b16 %v321
    %v393 = vunpack.c.h.b16 %v321
    %v394 = vunpack.c.l.b16 %v322
    %v395 = vunpack.c.h.b16 %v322
    %v396 = vunpack.c.l.b16 %v323
    %v397 = vunpack.c.h.b16 %v323
    %v398 = vunpack.c.l.b16 %v324
    %v399 = vunpack.c.h.b16 %v324
    %v400 = vunpack.c.l.b16 %v325
    %v401 = vunpack.c.h.b16 %v325
    %v402 = vunpack.c.l.b16 %v326
    %v403 = vunpack.c.h.b16 %v326
    %v404 = vunpack.c.l.b16 %v327
    %v405 = vunpack.c.h.b16 %v327
    %v406 = vunpack.c.l.b16 %v328
    %v407 = vunpack.c.h.b16 %v328
    %v408 = vunpack.c.l.b16 %v329
    %v409 = vunpack.c.h.b16 %v329
    %v410 = vunpack.c.l.b16 %v330
    %v411 = vunpack.c.h.b16 %v330
    %v412 = vpack.c.b16 %v364, %v358
    %v413 = vpack.c.b16 %v365, %v359
    %v414 = vpack.c.b16 %v366, %v360
    %v415 = vpack.c.b16 %v367, %v361
    %v416 = vpack.c.b16 %v368, %v362
    %v417 = vpack.c.b16 %v369, %v363
    %v418 = vpack.c.b16 %v376, %v370
    %v419 = vpack.c.b16 %v377, %v371
    %v420 = vpack.c.b16 %v378, %v372
    %v421 = vpack.c.b16 %v379, %v373
    %v422 = vpack.c.b16 %v380, %v374
    %v423 = vpack.c.b16 %v381, %v375
    %v424 = vpack.c.b16 %v388, %v382
    %v425 = vpack.c.b16 %v389, %v383
    %v426 = vpack.c.b16 %v390, %v384
    %v427 = vpack.c.b16 %v391, %v385
    %v428 = vpack.c.b16 %v392, %v386
    %v429 = vpack.c.b16 %v393, %v387
    %v430 = vpack.c.b16 %v400, %v394
    %v431 = vpack.c.b16 %v401, %v395
    %v432 = vpack.c.b16 %v402, %v396
    %v433 = vpack.c.b16 %v403, %v397
    %v434 = vpack.c.b16 %v404, %v398
    %v435 = vpack.c.b16 %v405, %v399
    %v436 = vpack.c.b16 %v406, %v406
    %v437 = vpack.c.b16 %v407, %v407
    %v438 = vpack.c.b16 %v408, %v408
    %v439 = vpack.c.b16 %v409, %v409
    %v440 = vpack.c.b16 %v410, %v410
    %v441 = vpack.c.b16 %v411, %v411
    %vm466 = vcmask 588800
    %v468 = vsel %vm466, %v303, 0
    %vm470 = vcmask 1043456
    %v472 = vsel %vm470, %v436, 0
    %v475 = vsel %vm470, %v437, 0
    %v478 = vsel %vm470, %v438, 0
    %v481 = vsel %vm470, %v439, 0
    %v484 = vsel %vm470, %v440, 0
    %v487 = vsel %vm470, %v441, 0
    %489 = vmatprep.subr.bf16.mxu0 %v413
    %490 = vmatpush1.bf16.msra.mxu0 %v412
    %491 = vmatprep.subr.bf16.mxu0 %v419
    %492 = vmatpush1.bf16.msra.mxu0 %v418
    %493 = vmatprep.subr.bf16.mxu0 %v425
    %494 = vmatpush1.bf16.msra.mxu0 %v424
    %495 = vmatprep.subr.bf16.mxu0 %v431
    %496 = vmatpush1.bf16.msra.mxu0 %v430
    %497 = vmatprep.subr.bf16.mxu0 %v475
    %498 = vmatpush1.bf16.msra.mxu0 %v472
    %499 = vmatprep.subr.bf16.mxu0 0
    %500 = vmatpush1.bf16.msra.mxu0 0
    %501 = vmatprep.subr.bf16.mxu0 0
    %502 = vmatpush1.bf16.msra.mxu0 0
    %503 = vmatprep.subr.bf16.mxu0 0
    %504 = vmatpush1.bf16.msra.mxu0 0
    %505 = vmatprep.subr.bf16.mxu0 0
    %506 = vmatpush1.bf16.msra.mxu0 0
    %507 = vmatprep.subr.bf16.mxu0 0
    %508 = vmatpush1.bf16.msra.mxu0 0
    %509 = vmatprep.subr.bf16.mxu0 0
    %510 = vmatpush1.bf16.msra.mxu0 0
    %511 = vmatprep.subr.bf16.mxu0 0
    %512 = vmatpush1.bf16.msra.mxu0 0
    %513 = vmatprep.subr.bf16.mxu0 0
    %514 = vmatpush1.bf16.msra.mxu0 0
    %515 = vmatprep.subr.bf16.mxu0 0
    %516 = vmatpush1.bf16.msra.mxu0 0
    %517 = vmatprep.subr.bf16.mxu0 0
    %518 = vmatpush1.bf16.msra.mxu0 0
    %519 = vmatprep.subr.bf16.mxu0 0
    %520 = vmatpush1.bf16.msra.mxu0 0
    %521 = vmatprep.mubr.bf16.mxu0 0
    %522 = vmatmul.mubr.bf16.gmra.mrb[0].mxu0 %v468
    %v523 = vpop.f32.mrb[0].mxu0
    %v524 = vadd.f32 0.0, %v523
    %v525 = vpop.f32.mrb[0].mxu0
    %v526 = vadd.f32 0.0, %v525
    %v527 = vpop.f32.mrb[0].mxu0
    %v528 = vpop.f32.mrb[0].mxu0
    %529 = vdwg.mxu0
    %530 = vmatprep.subr.bf16.mxu0 %v415
    %531 = vmatpush1.bf16.msra.mxu0 %v414
    %532 = vmatprep.subr.bf16.mxu0 %v421
    %533 = vmatpush1.bf16.msra.mxu0 %v420
    %534 = vmatprep.subr.bf16.mxu0 %v427
    %535 = vmatpush1.bf16.msra.mxu0 %v426
    %536 = vmatprep.subr.bf16.mxu0 %v433
    %537 = vmatpush1.bf16.msra.mxu0 %v432
    %538 = vmatprep.subr.bf16.mxu0 %v481
    %539 = vmatpush1.bf16.msra.mxu0 %v478
    %540 = vmatprep.subr.bf16.mxu0 0
    %541 = vmatpush1.bf16.msra.mxu0 0
    %542 = vmatprep.subr.bf16.mxu0 0
    %543 = vmatpush1.bf16.msra.mxu0 0
    %544 = vmatprep.subr.bf16.mxu0 0
    %545 = vmatpush1.bf16.msra.mxu0 0
    %546 = vmatprep.subr.bf16.mxu0 0
    %547 = vmatpush1.bf16.msra.mxu0 0
    %548 = vmatprep.subr.bf16.mxu0 0
    %549 = vmatpush1.bf16.msra.mxu0 0
    %550 = vmatprep.subr.bf16.mxu0 0
    %551 = vmatpush1.bf16.msra.mxu0 0
    %552 = vmatprep.subr.bf16.mxu0 0
    %553 = vmatpush1.bf16.msra.mxu0 0
    %554 = vmatprep.subr.bf16.mxu0 0
    %555 = vmatpush1.bf16.msra.mxu0 0
    %556 = vmatprep.subr.bf16.mxu0 0
    %557 = vmatpush1.bf16.msra.mxu0 0
    %558 = vmatprep.subr.bf16.mxu0 0
    %559 = vmatpush1.bf16.msra.mxu0 0
    %560 = vmatprep.subr.bf16.mxu0 0
    %561 = vmatpush1.bf16.msra.mxu0 0
    %562 = vmatprep.mubr.bf16.mxu0 0
    %563 = vmatmul.mubr.bf16.gmra.mrb[0].mxu0 %v468
    %v564 = vpop.f32.mrb[0].mxu0
    %v565 = vadd.f32 0.0, %v564
    %v566 = vpop.f32.mrb[0].mxu0
    %v567 = vadd.f32 0.0, %v566
    %v568 = vpop.f32.mrb[0].mxu0
    %v569 = vpop.f32.mrb[0].mxu0
    %570 = vdwg.mxu0
    %571 = vmatprep.subr.bf16.mxu0 %v417
    %572 = vmatpush1.bf16.msra.mxu0 %v416
    %573 = vmatprep.subr.bf16.mxu0 %v423
    %574 = vmatpush1.bf16.msra.mxu0 %v422
    %575 = vmatprep.subr.bf16.mxu0 %v429
    %576 = vmatpush1.bf16.msra.mxu0 %v428
    %577 = vmatprep.subr.bf16.mxu0 %v435
    %578 = vmatpush1.bf16.msra.mxu0 %v434
    %579 = vmatprep.subr.bf16.mxu0 %v487
    %580 = vmatpush1.bf16.msra.mxu0 %v484
    %581 = vmatprep.subr.bf16.mxu0 0
    %582 = vmatpush1.bf16.msra.mxu0 0
    %583 = vmatprep.subr.bf16.mxu0 0
    %584 = vmatpush1.bf16.msra.mxu0 0
    %585 = vmatprep.subr.bf16.mxu0 0
    %586 = vmatpush1.bf16.msra.mxu0 0
    %587 = vmatprep.subr.bf16.mxu0 0
    %588 = vmatpush1.bf16.msra.mxu0 0
    %589 = vmatprep.subr.bf16.mxu0 0
    %590 = vmatpush1.bf16.msra.mxu0 0
    %591 = vmatprep.subr.bf16.mxu0 0
    %592 = vmatpush1.bf16.msra.mxu0 0
    %593 = vmatprep.subr.bf16.mxu0 0
    %594 = vmatpush1.bf16.msra.mxu0 0
    %595 = vmatprep.subr.bf16.mxu0 0
    %596 = vmatpush1.bf16.msra.mxu0 0
    %597 = vmatprep.subr.bf16.mxu0 0
    %598 = vmatpush1.bf16.msra.mxu0 0
    %599 = vmatprep.subr.bf16.mxu0 0
    %600 = vmatpush1.bf16.msra.mxu0 0
    %601 = vmatprep.subr.bf16.mxu0 0
    %602 = vmatpush1.bf16.msra.mxu0 0
    %603 = vmatprep.mubr.bf16.mxu0 0
    %604 = vmatmul.mubr.bf16.gmra.mrb[0].mxu0 %v468
    %v605 = vpop.f32.mrb[0].mxu0
    %v606 = vadd.f32 0.0, %v605
    %v607 = vpop.f32.mrb[0].mxu0
    %v608 = vadd.f32 0.0, %v607
    %v609 = vpop.f32.mrb[0].mxu0
    %v610 = vpop.f32.mrb[0].mxu0
    %611 = vdwg.mxu0
    %v613 = vlaneseq
    %v614 = vshrl.u32 %v613, 7
    %v615 = vsub.s32 0, %v614
    %v616 = vrot.slane %v31, %v615
    %v617 = vlaneseq
    %v618 = vshrl.u32 %v617, 7
    %v619 = vsub.s32 1, %v618
    %v620 = vrot.slane %v31, %v619
    %v621 = vlaneseq
    %v622 = vshrl.u32 %v621, 7
    %v623 = vsub.s32 2, %v622
    %v624 = vrot.slane %v31, %v623
    %v625 = vlaneseq
    %v626 = vshrl.u32 %v625, 7
    %v627 = vsub.s32 3, %v626
    %v628 = vrot.slane %v31, %v627
    %v629 = vlaneseq
    %v630 = vshrl.u32 %v629, 7
    %v631 = vsub.s32 4, %v630
    %v632 = vrot.slane %v31, %v631
    %v633 = vlaneseq
    %v634 = vshrl.u32 %v633, 7
    %v635 = vsub.s32 5, %v634
    %v636 = vrot.slane %v31, %v635
    %v643 = vmul.f32 %v524, %v616
    %v644 = vmul.f32 %v526, %v620
    %v645 = vmul.f32 %v565, %v624
    %v646 = vmul.f32 %v567, %v628
    %v647 = vmul.f32 %v606, %v632
    %v648 = vmul.f32 %v608, %v636
    %v649 = vadd.f32 %v643, %v644
    %v650 = vadd.f32 %v649, %v645
    %v651 = vadd.f32 %v650, %v646
    %v652 = vadd.f32 %v651, %v647
    %v653 = vadd.f32 %v652, %v648
    %654 = vadd.xlane.f32.xlu0 %v653
    %v655 = vpop.xlane.xlu0 %654
    %v656 = vmul.f32 %v655, 0.001953125
    %v657 = vmul.f32 %v643, %v643
    %v658 = vmul.f32 %v644, %v644
    %v659 = vmul.f32 %v645, %v645
    %v660 = vmul.f32 %v646, %v646
    %v661 = vmul.f32 %v647, %v647
    %v662 = vmul.f32 %v648, %v648
    %v663 = vadd.f32 %v657, %v658
    %v664 = vadd.f32 %v663, %v659
    %v665 = vadd.f32 %v664, %v660
    %v666 = vadd.f32 %v665, %v661
    %v667 = vadd.f32 %v666, %v662
    %668 = vadd.xlane.f32.xlu0 %v667
    %v669 = vpop.xlane.xlu0 %668
    %v670 = vmul.f32 %v669, 0.001953125
    %v671 = vmul.f32 %v656, %v656
    %v672 = vsub.f32 %v670, %v671
    %v673 = vld [vmem:[%s3] sm:$0xff]
    %v674 = vadd.f32 %v672, 1e-05
    %v675 = vrsqrt.pop %v674
    %v676 = vmul.f32 %v673, %v675
    %v677 = vld [vmem:[%s4] sm:$0xff]
    %v678 = vmul.f32 %v656, %v676
    %v679 = vsub.f32 %v677, %v678
    %681 = vset.pattern.permute.xlu0 0
    %682 = vperm.xlu0 %681, %v676
    %v683 = vpop.permute.xlu0 %682
    %v685 = vmul.f32 %v524, %v683
    %v686 = vmul.f32 %v526, %v683
    %v687 = vmul.f32 %v565, %v683
    %v688 = vmul.f32 %v567, %v683
    %v689 = vmul.f32 %v606, %v683
    %v690 = vmul.f32 %v608, %v683
    %692 = vset.pattern.permute.xlu0 0
    %693 = vperm.xlu0 %692, %v679
    %v694 = vpop.permute.xlu0 %693
    %v696 = vadd.f32 %v685, %v694
    %v697 = vadd.f32 %v686, %v694
    %v698 = vadd.f32 %v687, %v694
    %v699 = vadd.f32 %v688, %v694
    %v700 = vadd.f32 %v689, %v694
    %v701 = vadd.f32 %v690, %v694
    %v702 = vmax.f32 %v696, 0.0
    %v703 = vmax.f32 %v697, 0.0
    %v704 = vmax.f32 %v698, 0.0
    %v705 = vmax.f32 %v699, 0.0
    %v706 = vmax.f32 %v700, 0.0
    %v707 = vmax.f32 %v701, 0.0
    %v708 = vmul.f32 %v702, %v616
    %v709 = vmul.f32 %v703, %v620
    %v710 = vmul.f32 %v704, %v624
    %v711 = vmul.f32 %v705, %v628
    %v712 = vmul.f32 %v706, %v632
    %v713 = vmul.f32 %v707, %v636
    %714 = vst [vmem:[#allocation4] sm:$0xf] 0
    %715 = vst [vmem:[#allocation4 + $0x1c] sm:$0xf] 0
    %v716 = vpack.c.bf16 %v708, %v708
    %v717 = vpack.c.bf16 %v709, %v709
    %v718 = vpack.c.bf16 %v710, %v710
    %v719 = vpack.c.bf16 %v711, %v711
    %v720 = vpack.c.bf16 %v712, %v712
    %v721 = vpack.c.bf16 %v713, %v713
    %v728 = vunpack.c.l.b16 %v716
    %v729 = vunpack.c.l.b16 %v717
    %v730 = vunpack.c.l.b16 %v718
    %v731 = vunpack.c.l.b16 %v719
    %v732 = vunpack.c.l.b16 %v720
    %v733 = vunpack.c.l.b16 %v721
    %v734 = vpack.c.b16 %v729, %v728
    %v735 = vpack.c.b16 %v731, %v730
    %v736 = vpack.c.b16 %v733, %v732
    %740 = vst [vmem:[#allocation4 + $0x4] sm:$0xff] %v734
    %741 = vst [vmem:[#allocation4 + $0xc] sm:$0xff] %v735
    %742 = vst [vmem:[#allocation4 + $0x14] sm:$0xff] %v736
    %v743 = vld [vmem:[#allocation4] sm:$0xff]
    %v744 = vld [vmem:[#allocation4 + $0x8] sm:$0xff]
    %v745 = vld [vmem:[#allocation4 + $0x10] sm:$0xff]
    %v746 = vld [vmem:[#allocation4 + $0x18] sm:$0xf]
    %751 = vrot.lane.b32.xlu0 %v743, 19
    %v752 = vpop.permute.xlu0 %751
    %753 = vrot.lane.b32.xlu0 %v744, 19
    %v754 = vpop.permute.xlu0 %753
    %755 = vrot.lane.b32.xlu0 %v745, 19
    %v756 = vpop.permute.xlu0 %755
    %757 = vrot.lane.b32.xlu0 %v746, 19
    %v758 = vpop.permute.xlu0 %757
    %v759 = vrot.slane %v752, 4
    %v760 = vrot.slane %v754, 4
    %v761 = vrot.slane %v756, 4
    %v762 = vrot.slane %v758, 4
    %v763 = vsel %vm52, %v759, %v760
    %v764 = vsel %vm54, %v752, %v763
    %v765 = vsel %vm52, %v760, %v761
    %v766 = vsel %vm54, %v754, %v765
    %v767 = vsel %vm52, %v761, %v762
    %v768 = vsel %vm54, %v756, %v767
    %772 = vst [vmem:[#allocation3] sm:$0xff] %v764
    %773 = vst [vmem:[#allocation3 + $0x8] sm:$0xff] %v766
    %774 = vst [vmem:[#allocation3 + $0x10] sm:$0xff] %v768
    %v775 = vld [vmem:[#allocation4] sm:$0xff]
    %v776 = vld [vmem:[#allocation4 + $0x8] sm:$0xff]
    %v777 = vld [vmem:[#allocation4 + $0x10] sm:$0xff]
    %v778 = vld [vmem:[#allocation4 + $0x18] sm:$0xf]
    %783 = vrot.lane.b32.xlu0 %v775, 18
    %v784 = vpop.permute.xlu0 %783
    %785 = vrot.lane.b32.xlu0 %v776, 18
    %v786 = vpop.permute.xlu0 %785
    %787 = vrot.lane.b32.xlu0 %v777, 18
    %v788 = vpop.permute.xlu0 %787
    %789 = vrot.lane.b32.xlu0 %v778, 18
    %v790 = vpop.permute.xlu0 %789
    %v791 = vrot.slane %v784, 4
    %v792 = vrot.slane %v786, 4
    %v793 = vrot.slane %v788, 4
    %v794 = vrot.slane %v790, 4
    %v795 = vsel %vm52, %v791, %v792
    %v796 = vsel %vm87, %v784, %v795
    %v797 = vsel %vm52, %v792, %v793
    %v798 = vsel %vm87, %v786, %v797
    %v799 = vsel %vm52, %v793, %v794
    %v800 = vsel %vm87, %v788, %v799
    %804 = vst [vmem:[#allocation3 + $0x18] sm:$0xff] %v796
    %805 = vst [vmem:[#allocation3 + $0x20] sm:$0xff] %v798
    %806 = vst [vmem:[#allocation3 + $0x28] sm:$0xff] %v800
    %v807 = vld [vmem:[#allocation4] sm:$0xff]
    %v808 = vld [vmem:[#allocation4 + $0x8] sm:$0xff]
    %v809 = vld [vmem:[#allocation4 + $0x10] sm:$0xff]
    %v810 = vld [vmem:[#allocation4 + $0x18] sm:$0xf]
    %815 = vrot.lane.b32.xlu0 %v807, 17
    %v816 = vpop.permute.xlu0 %815
    %817 = vrot.lane.b32.xlu0 %v808, 17
    %v818 = vpop.permute.xlu0 %817
    %819 = vrot.lane.b32.xlu0 %v809, 17
    %v820 = vpop.permute.xlu0 %819
    %821 = vrot.lane.b32.xlu0 %v810, 17
    %v822 = vpop.permute.xlu0 %821
    %v823 = vrot.slane %v816, 4
    %v824 = vrot.slane %v818, 4
    %v825 = vrot.slane %v820, 4
    %v826 = vrot.slane %v822, 4
    %v827 = vsel %vm52, %v823, %v824
    %v828 = vsel %vm120, %v816, %v827
    %v829 = vsel %vm52, %v824, %v825
    %v830 = vsel %vm120, %v818, %v829
    %v831 = vsel %vm52, %v825, %v826
    %v832 = vsel %vm120, %v820, %v831
    %836 = vst [vmem:[#allocation3 + $0x30] sm:$0xff] %v828
    %837 = vst [vmem:[#allocation3 + $0x38] sm:$0xff] %v830
    %838 = vst [vmem:[#allocation3 + $0x40] sm:$0xff] %v832
    %v839 = vld [vmem:[#allocation4] sm:$0xff]
    %v840 = vld [vmem:[#allocation4 + $0x8] sm:$0xff]
    %v841 = vld [vmem:[#allocation4 + $0x10] sm:$0xff]
    %v842 = vld [vmem:[#allocation4 + $0x18] sm:$0xf]
    %847 = vrot.lane.b32.xlu0 %v839, 1
    %v848 = vpop.permute.xlu0 %847
    %849 = vrot.lane.b32.xlu0 %v840, 1
    %v850 = vpop.permute.xlu0 %849
    %851 = vrot.lane.b32.xlu0 %v841, 1
    %v852 = vpop.permute.xlu0 %851
    %853 = vrot.lane.b32.xlu0 %v842, 1
    %v854 = vpop.permute.xlu0 %853
    %v855 = vrot.slane %v848, 4
    %v856 = vrot.slane %v850, 4
    %v857 = vrot.slane %v852, 4
    %v858 = vrot.slane %v854, 4
    %v859 = vsel %vm52, %v855, %v856
    %v860 = vsel %vm153, %v848, %v859
    %v861 = vsel %vm52, %v856, %v857
    %v862 = vsel %vm153, %v850, %v861
    %v863 = vsel %vm52, %v857, %v858
    %v864 = vsel %vm153, %v852, %v863
    %868 = vst [vmem:[#allocation3 + $0x48] sm:$0xff] %v860
    %869 = vst [vmem:[#allocation3 + $0x50] sm:$0xff] %v862
    %870 = vst [vmem:[#allocation3 + $0x58] sm:$0xff] %v864
    %v871 = vld [vmem:[#allocation4 + $0x4] sm:$0xff]
    %v872 = vld [vmem:[#allocation4 + $0xc] sm:$0xff]
    %v873 = vld [vmem:[#allocation4 + $0x14] sm:$0xff]
    %874 = vst [vmem:[#allocation3 + $0x60] sm:$0xff] %v871
    %875 = vst [vmem:[#allocation3 + $0x68] sm:$0xff] %v872
    %876 = vst [vmem:[#allocation3 + $0x70] sm:$0xff] %v873
    %v877 = vld [vmem:[#allocation4 + $0x4] sm:$0xff]
    %v878 = vld [vmem:[#allocation4 + $0xc] sm:$0xff]
    %v879 = vld [vmem:[#allocation4 + $0x14] sm:$0xff]
    %v880 = vld [vmem:[#allocation4 + $0x1c] sm:$0xf]
    %885 = vrot.lane.b32.xlu0 %v877, 127
    %v886 = vpop.permute.xlu0 %885
    %887 = vrot.lane.b32.xlu0 %v878, 127
    %v888 = vpop.permute.xlu0 %887
    %889 = vrot.lane.b32.xlu0 %v879, 127
    %v890 = vpop.permute.xlu0 %889
    %891 = vrot.lane.b32.xlu0 %v880, 127
    %v892 = vpop.permute.xlu0 %891
    %v893 = vrot.slane %v886, 4
    %v894 = vrot.slane %v888, 4
    %v895 = vrot.slane %v890, 4
    %v896 = vrot.slane %v892, 4
    %v897 = vsel %vm52, %v893, %v894
    %v898 = vsel %vm192, %v886, %v897
    %v899 = vsel %vm52, %v894, %v895
    %v900 = vsel %vm192, %v888, %v899
    %v901 = vsel %vm52, %v895, %v896
    %v902 = vsel %vm192, %v890, %v901
    %906 = vst [vmem:[#allocation3 + $0x78] sm:$0xff] %v898
    %907 = vst [vmem:[#allocation3 + $0x80] sm:$0xff] %v900
    %908 = vst [vmem:[#allocation3 + $0x88] sm:$0xff] %v902
    %v909 = vld [vmem:[#allocation4 + $0x4] sm:$0xff]
    %v910 = vld [vmem:[#allocation4 + $0xc] sm:$0xff]
    %v911 = vld [vmem:[#allocation4 + $0x14] sm:$0xff]
    %v912 = vld [vmem:[#allocation4 + $0x1c] sm:$0xf]
    %917 = vrot.lane.b32.xlu0 %v909, 111
    %v918 = vpop.permute.xlu0 %917
    %919 = vrot.lane.b32.xlu0 %v910, 111
    %v920 = vpop.permute.xlu0 %919
    %921 = vrot.lane.b32.xlu0 %v911, 111
    %v922 = vpop.permute.xlu0 %921
    %923 = vrot.lane.b32.xlu0 %v912, 111
    %v924 = vpop.permute.xlu0 %923
    %v925 = vrot.slane %v918, 4
    %v926 = vrot.slane %v920, 4
    %v927 = vrot.slane %v922, 4
    %v928 = vrot.slane %v924, 4
    %v929 = vsel %vm52, %v925, %v926
    %v930 = vsel %vm225, %v918, %v929
    %v931 = vsel %vm52, %v926, %v927
    %v932 = vsel %vm225, %v920, %v931
    %v933 = vsel %vm52, %v927, %v928
    %v934 = vsel %vm225, %v922, %v933
    %938 = vst [vmem:[#allocation3 + $0x90] sm:$0xff] %v930
    %939 = vst [vmem:[#allocation3 + $0x98] sm:$0xff] %v932
    %940 = vst [vmem:[#allocation3 + $0xa0] sm:$0xff] %v934
    %v941 = vld [vmem:[#allocation4 + $0x4] sm:$0xff]
    %v942 = vld [vmem:[#allocation4 + $0xc] sm:$0xff]
    %v943 = vld [vmem:[#allocation4 + $0x14] sm:$0xff]
    %v944 = vld [vmem:[#allocation4 + $0x1c] sm:$0xf]
    %949 = vrot.lane.b32.xlu0 %v941, 110
    %v950 = vpop.permute.xlu0 %949
    %951 = vrot.lane.b32.xlu0 %v942, 110
    %v952 = vpop.permute.xlu0 %951
    %953 = vrot.lane.b32.xlu0 %v943, 110
    %v954 = vpop.permute.xlu0 %953
    %955 = vrot.lane.b32.xlu0 %v944, 110
    %v956 = vpop.permute.xlu0 %955
    %v957 = vrot.slane %v950, 4
    %v958 = vrot.slane %v952, 4
    %v959 = vrot.slane %v954, 4
    %v960 = vrot.slane %v956, 4
    %v961 = vsel %vm52, %v957, %v958
    %v962 = vsel %vm258, %v950, %v961
    %v963 = vsel %vm52, %v958, %v959
    %v964 = vsel %vm258, %v952, %v963
    %v965 = vsel %vm52, %v959, %v960
    %v966 = vsel %vm258, %v954, %v965
    %970 = vst [vmem:[#allocation3 + $0xa8] sm:$0xff] %v962
    %971 = vst [vmem:[#allocation3 + $0xb0] sm:$0xff] %v964
    %972 = vst [vmem:[#allocation3 + $0xb8] sm:$0xff] %v966
    %v973 = vld [vmem:[#allocation4 + $0x4] sm:$0xff]
    %v974 = vld [vmem:[#allocation4 + $0xc] sm:$0xff]
    %v975 = vld [vmem:[#allocation4 + $0x14] sm:$0xff]
    %v976 = vld [vmem:[#allocation4 + $0x1c] sm:$0xf]
    %981 = vrot.lane.b32.xlu0 %v973, 109
    %v982 = vpop.permute.xlu0 %981
    %983 = vrot.lane.b32.xlu0 %v974, 109
    %v984 = vpop.permute.xlu0 %983
    %985 = vrot.lane.b32.xlu0 %v975, 109
    %v986 = vpop.permute.xlu0 %985
    %987 = vrot.lane.b32.xlu0 %v976, 109
    %v988 = vpop.permute.xlu0 %987
    %v989 = vrot.slane %v982, 4
    %v990 = vrot.slane %v984, 4
    %v991 = vrot.slane %v986, 4
    %v992 = vrot.slane %v988, 4
    %v993 = vsel %vm52, %v989, %v990
    %v994 = vsel %vm291, %v982, %v993
    %v995 = vsel %vm52, %v990, %v991
    %v996 = vsel %vm291, %v984, %v995
    %v997 = vsel %vm52, %v991, %v992
    %v998 = vsel %vm291, %v986, %v997
    %1002 = vst [vmem:[#allocation3 + $0xc0] sm:$0xff] %v994
    %1003 = vst [vmem:[#allocation3 + $0xc8] sm:$0xff] %v996
    %1004 = vst [vmem:[#allocation3 + $0xd0] sm:$0xff] %v998
    %v1005 = vld [vmem:[%s5] sm:$0xf]
    %v1006 = vld [vmem:[#allocation3] sm:$0xff]
    %v1007 = vld [vmem:[#allocation3 + $0x8] sm:$0xff]
    %v1008 = vld [vmem:[#allocation3 + $0x10] sm:$0xff]
    %v1009 = vld [vmem:[#allocation3 + $0x18] sm:$0xff]
    %v1010 = vld [vmem:[#allocation3 + $0x20] sm:$0xff]
    %v1011 = vld [vmem:[#allocation3 + $0x28] sm:$0xff]
    %v1012 = vld [vmem:[#allocation3 + $0x30] sm:$0xff]
    %v1013 = vld [vmem:[#allocation3 + $0x38] sm:$0xff]
    %v1014 = vld [vmem:[#allocation3 + $0x40] sm:$0xff]
    %v1015 = vld [vmem:[#allocation3 + $0x48] sm:$0xff]
    %v1016 = vld [vmem:[#allocation3 + $0x50] sm:$0xff]
    %v1017 = vld [vmem:[#allocation3 + $0x58] sm:$0xff]
    %v1018 = vld [vmem:[#allocation3 + $0x60] sm:$0xff]
    %v1019 = vld [vmem:[#allocation3 + $0x68] sm:$0xff]
    %v1020 = vld [vmem:[#allocation3 + $0x70] sm:$0xff]
    %v1021 = vld [vmem:[#allocation3 + $0x78] sm:$0xff]
    %v1022 = vld [vmem:[#allocation3 + $0x80] sm:$0xff]
    %v1023 = vld [vmem:[#allocation3 + $0x88] sm:$0xff]
    %v1024 = vld [vmem:[#allocation3 + $0x90] sm:$0xff]
    %v1025 = vld [vmem:[#allocation3 + $0x98] sm:$0xff]
    %v1026 = vld [vmem:[#allocation3 + $0xa0] sm:$0xff]
    %v1027 = vld [vmem:[#allocation3 + $0xa8] sm:$0xff]
    %v1028 = vld [vmem:[#allocation3 + $0xb0] sm:$0xff]
    %v1029 = vld [vmem:[#allocation3 + $0xb8] sm:$0xff]
    %v1030 = vld [vmem:[#allocation3 + $0xc0] sm:$0xff]
    %v1031 = vld [vmem:[#allocation3 + $0xc8] sm:$0xff]
    %v1032 = vld [vmem:[#allocation3 + $0xd0] sm:$0xff]
    %v1060 = vunpack.c.l.b16 %v1006
    %v1061 = vunpack.c.h.b16 %v1006
    %v1062 = vunpack.c.l.b16 %v1007
    %v1063 = vunpack.c.h.b16 %v1007
    %v1064 = vunpack.c.l.b16 %v1008
    %v1065 = vunpack.c.h.b16 %v1008
    %v1066 = vunpack.c.l.b16 %v1009
    %v1067 = vunpack.c.h.b16 %v1009
    %v1068 = vunpack.c.l.b16 %v1010
    %v1069 = vunpack.c.h.b16 %v1010
    %v1070 = vunpack.c.l.b16 %v1011
    %v1071 = vunpack.c.h.b16 %v1011
    %v1072 = vunpack.c.l.b16 %v1012
    %v1073 = vunpack.c.h.b16 %v1012
    %v1074 = vunpack.c.l.b16 %v1013
    %v1075 = vunpack.c.h.b16 %v1013
    %v1076 = vunpack.c.l.b16 %v1014
    %v1077 = vunpack.c.h.b16 %v1014
    %v1078 = vunpack.c.l.b16 %v1015
    %v1079 = vunpack.c.h.b16 %v1015
    %v1080 = vunpack.c.l.b16 %v1016
    %v1081 = vunpack.c.h.b16 %v1016
    %v1082 = vunpack.c.l.b16 %v1017
    %v1083 = vunpack.c.h.b16 %v1017
    %v1084 = vunpack.c.l.b16 %v1018
    %v1085 = vunpack.c.h.b16 %v1018
    %v1086 = vunpack.c.l.b16 %v1019
    %v1087 = vunpack.c.h.b16 %v1019
    %v1088 = vunpack.c.l.b16 %v1020
    %v1089 = vunpack.c.h.b16 %v1020
    %v1090 = vunpack.c.l.b16 %v1021
    %v1091 = vunpack.c.h.b16 %v1021
    %v1092 = vunpack.c.l.b16 %v1022
    %v1093 = vunpack.c.h.b16 %v1022
    %v1094 = vunpack.c.l.b16 %v1023
    %v1095 = vunpack.c.h.b16 %v1023
    %v1096 = vunpack.c.l.b16 %v1024
    %v1097 = vunpack.c.h.b16 %v1024
    %v1098 = vunpack.c.l.b16 %v1025
    %v1099 = vunpack.c.h.b16 %v1025
    %v1100 = vunpack.c.l.b16 %v1026
    %v1101 = vunpack.c.h.b16 %v1026
    %v1102 = vunpack.c.l.b16 %v1027
    %v1103 = vunpack.c.h.b16 %v1027
    %v1104 = vunpack.c.l.b16 %v1028
    %v1105 = vunpack.c.h.b16 %v1028
    %v1106 = vunpack.c.l.b16 %v1029
    %v1107 = vunpack.c.h.b16 %v1029
    %v1108 = vunpack.c.l.b16 %v1030
    %v1109 = vunpack.c.h.b16 %v1030
    %v1110 = vunpack.c.l.b16 %v1031
    %v1111 = vunpack.c.h.b16 %v1031
    %v1112 = vunpack.c.l.b16 %v1032
    %v1113 = vunpack.c.h.b16 %v1032
    %v1114 = vpack.c.b16 %v1066, %v1060
    %v1115 = vpack.c.b16 %v1067, %v1061
    %v1116 = vpack.c.b16 %v1068, %v1062
    %v1117 = vpack.c.b16 %v1069, %v1063
    %v1118 = vpack.c.b16 %v1070, %v1064
    %v1119 = vpack.c.b16 %v1071, %v1065
    %v1120 = vpack.c.b16 %v1078, %v1072
    %v1121 = vpack.c.b16 %v1079, %v1073
    %v1122 = vpack.c.b16 %v1080, %v1074
    %v1123 = vpack.c.b16 %v1081, %v1075
    %v1124 = vpack.c.b16 %v1082, %v1076
    %v1125 = vpack.c.b16 %v1083, %v1077
    %v1126 = vpack.c.b16 %v1090, %v1084
    %v1127 = vpack.c.b16 %v1091, %v1085
    %v1128 = vpack.c.b16 %v1092, %v1086
    %v1129 = vpack.c.b16 %v1093, %v1087
    %v1130 = vpack.c.b16 %v1094, %v1088
    %v1131 = vpack.c.b16 %v1095, %v1089
    %v1132 = vpack.c.b16 %v1102, %v1096
    %v1133 = vpack.c.b16 %v1103, %v1097
    %v1134 = vpack.c.b16 %v1104, %v1098
    %v1135 = vpack.c.b16 %v1105, %v1099
    %v1136 = vpack.c.b16 %v1106, %v1100
    %v1137 = vpack.c.b16 %v1107, %v1101
    %v1138 = vpack.c.b16 %v1108, %v1108
    %v1139 = vpack.c.b16 %v1109, %v1109
    %v1140 = vpack.c.b16 %v1110, %v1110
    %v1141 = vpack.c.b16 %v1111, %v1111
    %v1142 = vpack.c.b16 %v1112, %v1112
    %v1143 = vpack.c.b16 %v1113, %v1113
    %v1169 = vsel %vm466, %v1005, 0
    %v1172 = vsel %vm470, %v1138, 0
    %v1175 = vsel %vm470, %v1139, 0
    %v1178 = vsel %vm470, %v1140, 0
    %v1181 = vsel %vm470, %v1141, 0
    %v1184 = vsel %vm470, %v1142, 0
    %v1187 = vsel %vm470, %v1143, 0
    %1189 = vmatprep.subr.bf16.mxu0 %v1115
    %1190 = vmatpush1.bf16.msra.mxu0 %v1114
    %1191 = vmatprep.subr.bf16.mxu0 %v1121
    %1192 = vmatpush1.bf16.msra.mxu0 %v1120
    %1193 = vmatprep.subr.bf16.mxu0 %v1127
    %1194 = vmatpush1.bf16.msra.mxu0 %v1126
    %1195 = vmatprep.subr.bf16.mxu0 %v1133
    %1196 = vmatpush1.bf16.msra.mxu0 %v1132
    %1197 = vmatprep.subr.bf16.mxu0 %v1175
    %1198 = vmatpush1.bf16.msra.mxu0 %v1172
    %1199 = vmatprep.subr.bf16.mxu0 0
    %1200 = vmatpush1.bf16.msra.mxu0 0
    %1201 = vmatprep.subr.bf16.mxu0 0
    %1202 = vmatpush1.bf16.msra.mxu0 0
    %1203 = vmatprep.subr.bf16.mxu0 0
    %1204 = vmatpush1.bf16.msra.mxu0 0
    %1205 = vmatprep.subr.bf16.mxu0 0
    %1206 = vmatpush1.bf16.msra.mxu0 0
    %1207 = vmatprep.subr.bf16.mxu0 0
    %1208 = vmatpush1.bf16.msra.mxu0 0
    %1209 = vmatprep.subr.bf16.mxu0 0
    %1210 = vmatpush1.bf16.msra.mxu0 0
    %1211 = vmatprep.subr.bf16.mxu0 0
    %1212 = vmatpush1.bf16.msra.mxu0 0
    %1213 = vmatprep.subr.bf16.mxu0 0
    %1214 = vmatpush1.bf16.msra.mxu0 0
    %1215 = vmatprep.subr.bf16.mxu0 0
    %1216 = vmatpush1.bf16.msra.mxu0 0
    %1217 = vmatprep.subr.bf16.mxu0 0
    %1218 = vmatpush1.bf16.msra.mxu0 0
    %1219 = vmatprep.subr.bf16.mxu0 0
    %1220 = vmatpush1.bf16.msra.mxu0 0
    %1221 = vmatprep.mubr.bf16.mxu0 0
    %1222 = vmatmul.mubr.bf16.gmra.mrb[0].mxu0 %v1169
    %v1223 = vpop.f32.mrb[0].mxu0
    %v1224 = vadd.f32 0.0, %v1223
    %v1225 = vpop.f32.mrb[0].mxu0
    %v1226 = vadd.f32 0.0, %v1225
    %v1227 = vpop.f32.mrb[0].mxu0
    %v1228 = vpop.f32.mrb[0].mxu0
    %1229 = vdwg.mxu0
    %1230 = vmatprep.subr.bf16.mxu0 %v1117
    %1231 = vmatpush1.bf16.msra.mxu0 %v1116
    %1232 = vmatprep.subr.bf16.mxu0 %v1123
    %1233 = vmatpush1.bf16.msra.mxu0 %v1122
    %1234 = vmatprep.subr.bf16.mxu0 %v1129
    %1235 = vmatpush1.bf16.msra.mxu0 %v1128
    %1236 = vmatprep.subr.bf16.mxu0 %v1135
    %1237 = vmatpush1.bf16.msra.mxu0 %v1134
    %1238 = vmatprep.subr.bf16.mxu0 %v1181
    %1239 = vmatpush1.bf16.msra.mxu0 %v1178
    %1240 = vmatprep.subr.bf16.mxu0 0
    %1241 = vmatpush1.bf16.msra.mxu0 0
    %1242 = vmatprep.subr.bf16.mxu0 0
    %1243 = vmatpush1.bf16.msra.mxu0 0
    %1244 = vmatprep.subr.bf16.mxu0 0
    %1245 = vmatpush1.bf16.msra.mxu0 0
    %1246 = vmatprep.subr.bf16.mxu0 0
    %1247 = vmatpush1.bf16.msra.mxu0 0
    %1248 = vmatprep.subr.bf16.mxu0 0
    %1249 = vmatpush1.bf16.msra.mxu0 0
    %1250 = vmatprep.subr.bf16.mxu0 0
    %1251 = vmatpush1.bf16.msra.mxu0 0
    %1252 = vmatprep.subr.bf16.mxu0 0
    %1253 = vmatpush1.bf16.msra.mxu0 0
    %1254 = vmatprep.subr.bf16.mxu0 0
    %1255 = vmatpush1.bf16.msra.mxu0 0
    %1256 = vmatprep.subr.bf16.mxu0 0
    %1257 = vmatpush1.bf16.msra.mxu0 0
    %1258 = vmatprep.subr.bf16.mxu0 0
    %1259 = vmatpush1.bf16.msra.mxu0 0
    %1260 = vmatprep.subr.bf16.mxu0 0
    %1261 = vmatpush1.bf16.msra.mxu0 0
    %1262 = vmatprep.mubr.bf16.mxu0 0
    %1263 = vmatmul.mubr.bf16.gmra.mrb[0].mxu0 %v1169
    %v1264 = vpop.f32.mrb[0].mxu0
    %v1265 = vadd.f32 0.0, %v1264
    %v1266 = vpop.f32.mrb[0].mxu0
    %v1267 = vadd.f32 0.0, %v1266
    %v1268 = vpop.f32.mrb[0].mxu0
    %v1269 = vpop.f32.mrb[0].mxu0
    %1270 = vdwg.mxu0
    %1271 = vmatprep.subr.bf16.mxu0 %v1119
    %1272 = vmatpush1.bf16.msra.mxu0 %v1118
    %1273 = vmatprep.subr.bf16.mxu0 %v1125
    %1274 = vmatpush1.bf16.msra.mxu0 %v1124
    %1275 = vmatprep.subr.bf16.mxu0 %v1131
    %1276 = vmatpush1.bf16.msra.mxu0 %v1130
    %1277 = vmatprep.subr.bf16.mxu0 %v1137
    %1278 = vmatpush1.bf16.msra.mxu0 %v1136
    %1279 = vmatprep.subr.bf16.mxu0 %v1187
    %1280 = vmatpush1.bf16.msra.mxu0 %v1184
    %1281 = vmatprep.subr.bf16.mxu0 0
    %1282 = vmatpush1.bf16.msra.mxu0 0
    %1283 = vmatprep.subr.bf16.mxu0 0
    %1284 = vmatpush1.bf16.msra.mxu0 0
    %1285 = vmatprep.subr.bf16.mxu0 0
    %1286 = vmatpush1.bf16.msra.mxu0 0
    %1287 = vmatprep.subr.bf16.mxu0 0
    %1288 = vmatpush1.bf16.msra.mxu0 0
    %1289 = vmatprep.subr.bf16.mxu0 0
    %1290 = vmatpush1.bf16.msra.mxu0 0
    %1291 = vmatprep.subr.bf16.mxu0 0
    %1292 = vmatpush1.bf16.msra.mxu0 0
    %1293 = vmatprep.subr.bf16.mxu0 0
    %1294 = vmatpush1.bf16.msra.mxu0 0
    %1295 = vmatprep.subr.bf16.mxu0 0
    %1296 = vmatpush1.bf16.msra.mxu0 0
    %1297 = vmatprep.subr.bf16.mxu0 0
    %1298 = vmatpush1.bf16.msra.mxu0 0
    %1299 = vmatprep.subr.bf16.mxu0 0
    %1300 = vmatpush1.bf16.msra.mxu0 0
    %1301 = vmatprep.subr.bf16.mxu0 0
    %1302 = vmatpush1.bf16.msra.mxu0 0
    %1303 = vmatprep.mubr.bf16.mxu0 0
    %1304 = vmatmul.mubr.bf16.gmra.mrb[0].mxu0 %v1169
    %v1305 = vpop.f32.mrb[0].mxu0
    %v1306 = vadd.f32 0.0, %v1305
    %v1307 = vpop.f32.mrb[0].mxu0
    %v1308 = vadd.f32 0.0, %v1307
    %v1309 = vpop.f32.mrb[0].mxu0
    %v1310 = vpop.f32.mrb[0].mxu0
    %1311 = vdwg.mxu0
    %v1312 = vmul.f32 %v1224, %v616
    %v1313 = vmul.f32 %v1226, %v620
    %v1314 = vmul.f32 %v1265, %v624
    %v1315 = vmul.f32 %v1267, %v628
    %v1316 = vmul.f32 %v1306, %v632
    %v1317 = vmul.f32 %v1308, %v636
    %v1318 = vadd.f32 %v1312, %v1313
    %v1319 = vadd.f32 %v1318, %v1314
    %v1320 = vadd.f32 %v1319, %v1315
    %v1321 = vadd.f32 %v1320, %v1316
    %v1322 = vadd.f32 %v1321, %v1317
    %1323 = vadd.xlane.f32.xlu0 %v1322
    %v1324 = vpop.xlane.xlu0 %1323
    %v1325 = vmul.f32 %v1324, 0.001953125
    %v1326 = vmul.f32 %v1312, %v1312
    %v1327 = vmul.f32 %v1313, %v1313
    %v1328 = vmul.f32 %v1314, %v1314
    %v1329 = vmul.f32 %v1315, %v1315
    %v1330 = vmul.f32 %v1316, %v1316
    %v1331 = vmul.f32 %v1317, %v1317
    %v1332 = vadd.f32 %v1326, %v1327
    %v1333 = vadd.f32 %v1332, %v1328
    %v1334 = vadd.f32 %v1333, %v1329
    %v1335 = vadd.f32 %v1334, %v1330
    %v1336 = vadd.f32 %v1335, %v1331
    %1337 = vadd.xlane.f32.xlu0 %v1336
    %v1338 = vpop.xlane.xlu0 %1337
    %v1339 = vmul.f32 %v1338, 0.001953125
    %v1340 = vmul.f32 %v1325, %v1325
    %v1341 = vsub.f32 %v1339, %v1340
    %v1342 = vld [vmem:[%s6] sm:$0xff]
    %v1343 = vadd.f32 %v1341, 1e-05
    %v1344 = vrsqrt.pop %v1343
    %v1345 = vmul.f32 %v1342, %v1344
    %v1346 = vld [vmem:[%s7] sm:$0xff]
    %v1347 = vmul.f32 %v1325, %v1345
    %v1348 = vsub.f32 %v1346, %v1347
    %1350 = vset.pattern.permute.xlu0 0
    %1351 = vperm.xlu0 %1350, %v1345
    %v1352 = vpop.permute.xlu0 %1351
    %v1354 = vmul.f32 %v1224, %v1352
    %v1355 = vmul.f32 %v1226, %v1352
    %v1356 = vmul.f32 %v1265, %v1352
    %v1357 = vmul.f32 %v1267, %v1352
    %v1358 = vmul.f32 %v1306, %v1352
    %v1359 = vmul.f32 %v1308, %v1352
    %1361 = vset.pattern.permute.xlu0 0
    %1362 = vperm.xlu0 %1361, %v1348
    %v1363 = vpop.permute.xlu0 %1362
    %v1365 = vadd.f32 %v1354, %v1363
    %v1366 = vadd.f32 %v1355, %v1363
    %v1367 = vadd.f32 %v1356, %v1363
    %v1368 = vadd.f32 %v1357, %v1363
    %v1369 = vadd.f32 %v1358, %v1363
    %v1370 = vadd.f32 %v1359, %v1363
    %v1371 = vmax.f32 %v1365, 0.0
    %v1372 = vmax.f32 %v1366, 0.0
    %v1373 = vmax.f32 %v1367, 0.0
    %v1374 = vmax.f32 %v1368, 0.0
    %v1375 = vmax.f32 %v1369, 0.0
    %v1376 = vmax.f32 %v1370, 0.0
    %1377 = vst [vmem:[#allocation5] sm:$0xff] %v1371
    %1378 = vst [vmem:[#allocation5 + $0x8] sm:$0xff] %v1372
    %1379 = vst [vmem:[#allocation5 + $0x10] sm:$0xff] %v1373
    %1380 = vst [vmem:[#allocation5 + $0x18] sm:$0xff] %v1374
    %1381 = vst [vmem:[#allocation5 + $0x20] sm:$0xff] %v1375
    %1382 = vst [vmem:[#allocation5 + $0x28] sm:$0xff] %v1376
    // Predicated region
    $region34: #{tpu_custom_call.1} parent=1 // pred_check
      _
    $region35: #{tpu_custom_call.1} parent=1 // pred_check_branch
      %1384 = sbr.rel (0) target = $region37
    $region36: #{tpu_custom_call.1} parent=1 // pred_region
      %s1386 = ssub.s32 768, 768
      %1387 = vsyncadd [#allocation6], %s1386
      %s1389 = sshll.u32 [#allocation5], 4
      %s1390 = int_to_ptr.vmem [resolvable:$true] %s1389
      %1392 = dma.vmem_to_hbm [thread:$0]  %s1390, 768, %s8, [#allocation6]
    $region37: #{tpu_custom_call.1} parent=1 // pred_fallthru
      _
    // Predicated region
    $region38: #{tpu_custom_call.1} parent=1 // pred_check
      _
    $region39: #{tpu_custom_call.1} parent=1 // pred_check_branch
      %1394 = sbr.rel (0) target = $region41
    $region40: #{tpu_custom_call.1} parent=1 // pred_region
      %1395 = dma.done [#allocation6], 768
    $region41: #{tpu_custom_call.1} parent=1 // pred_fallthru
      _
    %1396 = vsyncpa [#allocation6], 1

</llo_original>
